<compile_context>
chip_gen: v6e
topology: v6e:2x2x1
jax: 0.10.0
libtpu: 0.0.40
codegen_flags: <defaults>
</compile_context>

<pallas_src>
import math

import jax
import jax.numpy as jnp
from jax.experimental import pallas as pl
from jax.experimental.pallas import tpu as pltpu

# ---------------- config (small synthetic BERT) ----------------
VOCAB = 100
HIDDEN = 32
N_LAYERS = 2
N_HEADS = 2
HEAD_DIM = HIDDEN // N_HEADS
INTERMEDIATE = 64
MAX_POS = 16
NUM_CLASSES = 3
LN_EPS = 1e-12
LANE = 128  # lane-dense padded classifier width


# ---------------- fused whole-forward Pallas kernel (one grid step = one batch element) ----------------
def _bert_kernel(emb_ref, mask_ref,
                 emb_g_ref, emb_b_ref,
                 qkv_w_ref, qkv_b_ref,
                 o_w_ref, o_b_ref,
                 ln1_g_ref, ln1_b_ref,
                 i_w_ref, i_b_ref,
                 f_w_ref, f_b_ref,
                 ln2_g_ref, ln2_b_ref,
                 fc_w_ref, fc_b_ref,
                 out_ref):
    f32 = jnp.float32
    bf16 = jnp.bfloat16

    n_layers, n_heads, hidden, qkv_width = qkv_w_ref.shape
    head_dim = qkv_width // 3
    seq = emb_ref.shape[1]
    scale = 1.0 / math.sqrt(head_dim)

    def b16(x):
        return x.astype(bf16)

    def mm(a, w):
        # bf16 MXU inputs, f32 accumulation.
        return jnp.dot(b16(a), w, preferred_element_type=f32)

    def ln(x, g, b):
        mu = jnp.mean(x, axis=-1, keepdims=True)
        var = jnp.mean(jnp.square(x - mu), axis=-1, keepdims=True)
        return (x - mu) * jax.lax.rsqrt(var + LN_EPS) * g + b

    # Embedding LayerNorm (embedding gather/sum is wrapper-side XLA glue).
    h = ln(emb_ref[0], emb_g_ref[...], emb_b_ref[...])                 # (S, H) f32

    # Additive attention mask broadcast ONCE to (NH, S, S) and reused by
    # every layer (hoisted out of the layer/head loops).
    am = mask_ref[0]                                                   # (1, S) : 0 / -1e9
    mask3 = jnp.broadcast_to(am.reshape(1, 1, seq), (n_heads, seq, seq))

    for l in range(n_layers):
        x = h                                                          # (S, H)

        # Fused per-head QKV projection as one batched matmul; the shared
        # activation is broadcast over the head axis so no transpose/concat
        # is needed anywhere in attention.
        xh = jnp.broadcast_to(b16(x)[None], (n_heads, seq, hidden))    # (NH, S, H)
        qkv = jnp.einsum("hsd,hdf->hsf", xh, qkv_w_ref[l],
                         preferred_element_type=f32) + qkv_b_ref[l]    # (NH, S, 3*dh)
        q = qkv[:, :, 0:head_dim]
        k = qkv[:, :, head_dim:2 * head_dim]
        v = qkv[:, :, 2 * head_dim:3 * head_dim]

        s = jnp.einsum("hqd,hkd->hqk", b16(q), b16(k),
                       preferred_element_type=f32) * scale + mask3     # (NH, S, S)
        # NOTE: softmax max-subtraction intentionally dropped (scores are tiny
        # scaled dot products over K=32; masked entries at -1e9 underflow to
        # exactly 0). Re-add it if sequence length / hidden size / scale grow.
        e = jnp.exp(s)
        p = e * pl.reciprocal(jnp.sum(e, axis=-1, keepdims=True), approx=True)
        ctx = jnp.einsum("hqk,hkd->hqd", b16(p), b16(v),
                         preferred_element_type=f32)                   # (NH, S, dh)

        # Head merge folded into the output projection: per-head matmul with
        # the per-head row-slab of o_w, then sum over heads (no concatenate).
        attn = jnp.einsum("hsd,hdo->hso", b16(ctx), o_w_ref[l],
                          preferred_element_type=f32)                  # (NH, S, H)
        attn = jnp.sum(attn, axis=0) + o_b_ref[l]                      # (S, H)
        x = ln(x + attn, ln1_g_ref[l], ln1_b_ref[l])

        # TODO(synk): HF BERT uses exact erf-GELU; tanh approximation used for
        # guaranteed Mosaic (EUP) lowering.
        ffn = jax.nn.gelu(mm(x, i_w_ref[l]) + i_b_ref[l], approximate=True)
        ffn = mm(ffn, f_w_ref[l]) + f_b_ref[l]
        h = ln(x + ffn, ln2_g_ref[l], ln2_b_ref[l])

    # Lane-dense classifier: fc_w zero-padded to 128 output lanes, matmul done
    # for all S rows so the store is a full unmasked (S, 128) tile. The
    # wrapper slices out row 0 (CLS) and the first NUM_CLASSES lanes.
    out_ref[0] = mm(h, fc_w_ref[...]) + fc_b_ref[...]


# ---------------- parameters (deterministic, synthetic) ----------------
def init_params(key):
    def nrm(k, shape):
        return jax.random.normal(k, shape, jnp.float32) * 0.02

    keys = jax.random.split(key, 4 + N_LAYERS)
    params = {
        "word_emb": nrm(keys[0], (VOCAB, HIDDEN)),
        "pos_emb": nrm(keys[1], (MAX_POS, HIDDEN)),
        "type_emb": nrm(keys[2], (2, HIDDEN)),
        "emb_ln_g": jnp.ones((HIDDEN,), jnp.float32),
        "emb_ln_b": jnp.zeros((HIDDEN,), jnp.float32),
        "fc_w": nrm(keys[3], (HIDDEN, NUM_CLASSES)),
        "fc_b": jnp.zeros((NUM_CLASSES,), jnp.float32),
        "layers": [],
    }
    for l in range(N_LAYERS):
        lk = jax.random.split(keys[4 + l], 6)
        params["layers"].append({
            "q_w": nrm(lk[0], (HIDDEN, HIDDEN)), "q_b": jnp.zeros((HIDDEN,), jnp.float32),
            "k_w": nrm(lk[1], (HIDDEN, HIDDEN)), "k_b": jnp.zeros((HIDDEN,), jnp.float32),
            "v_w": nrm(lk[2], (HIDDEN, HIDDEN)), "v_b": jnp.zeros((HIDDEN,), jnp.float32),
            "o_w": nrm(lk[3], (HIDDEN, HIDDEN)), "o_b": jnp.zeros((HIDDEN,), jnp.float32),
            "ln1_g": jnp.ones((HIDDEN,), jnp.float32), "ln1_b": jnp.zeros((HIDDEN,), jnp.float32),
            "i_w": nrm(lk[4], (HIDDEN, INTERMEDIATE)), "i_b": jnp.zeros((INTERMEDIATE,), jnp.float32),
            "f_w": nrm(lk[5], (INTERMEDIATE, HIDDEN)), "f_b": jnp.zeros((HIDDEN,), jnp.float32),
            "ln2_g": jnp.ones((HIDDEN,), jnp.float32), "ln2_b": jnp.zeros((HIDDEN,), jnp.float32),
        })
    return params


# ---------------- one-time packing (runs OUTSIDE the jitted forward) ----------------
def pack_params(params):
    """Stack / head-split / bf16-cast / pad all weights exactly once."""
    layers = params["layers"]
    f32, bf16 = jnp.float32, jnp.bfloat16

    def head_cols(w):  # (H, H) -> (NH, H, dh): split output columns per head
        return jnp.stack([w[:, h * HEAD_DIM:(h + 1) * HEAD_DIM] for h in range(N_HEADS)])

    qkv_w, qkv_b, o_w = [], [], []
    for lp in layers:
        qkv_w.append(jnp.concatenate(
            [head_cols(lp["q_w"]), head_cols(lp["k_w"]), head_cols(lp["v_w"])], axis=-1))
        qkv_b.append(jnp.concatenate(
            [lp["q_b"].reshape(N_HEADS, 1, HEAD_DIM),
             lp["k_b"].reshape(N_HEADS, 1, HEAD_DIM),
             lp["v_b"].reshape(N_HEADS, 1, HEAD_DIM)], axis=-1))
        o_w.append(lp["o_w"].reshape(N_HEADS, HEAD_DIM, HIDDEN))       # per-head row slabs

    fc_w_pad = jnp.zeros((HIDDEN, LANE), f32).at[:, :NUM_CLASSES].set(params["fc_w"])
    fc_b_pad = jnp.zeros((1, LANE), f32).at[0, :NUM_CLASSES].set(params["fc_b"])

    packed = {
        "word_emb": params["word_emb"],
        "pos_emb": params["pos_emb"],
        "type_emb": params["type_emb"],
        "emb_g": params["emb_ln_g"].reshape(1, HIDDEN),
        "emb_b": params["emb_ln_b"].reshape(1, HIDDEN),
        "qkv_w": jnp.stack(qkv_w).astype(bf16),                        # (L, NH, H, 3*dh)
        "qkv_b": jnp.stack(qkv_b),                                     # (L, NH, 1, 3*dh)
        "o_w": jnp.stack(o_w).astype(bf16),                            # (L, NH, dh, H)
        "o_b": jnp.stack([lp["o_b"] for lp in layers]).reshape(-1, 1, HIDDEN),
        "ln1_g": jnp.stack([lp["ln1_g"] for lp in layers]).reshape(-1, 1, HIDDEN),
        "ln1_b": jnp.stack([lp["ln1_b"] for lp in layers]).reshape(-1, 1, HIDDEN),
        "i_w": jnp.stack([lp["i_w"] for lp in layers]).astype(bf16),   # (L, H, I)
        "i_b": jnp.stack([lp["i_b"] for lp in layers]).reshape(-1, 1, INTERMEDIATE),
        "f_w": jnp.stack([lp["f_w"] for lp in layers]).astype(bf16),   # (L, I, H)
        "f_b": jnp.stack([lp["f_b"] for lp in layers]).reshape(-1, 1, HIDDEN),
        "ln2_g": jnp.stack([lp["ln2_g"] for lp in layers]).reshape(-1, 1, HIDDEN),
        "ln2_b": jnp.stack([lp["ln2_b"] for lp in layers]).reshape(-1, 1, HIDDEN),
        "fc_w": fc_w_pad.astype(bf16),                                 # (H, 128)
        "fc_b": fc_b_pad,                                              # (1, 128)
    }
    return packed


_WEIGHT_ORDER = ["emb_g", "emb_b", "qkv_w", "qkv_b", "o_w", "o_b",
                 "ln1_g", "ln1_b", "i_w", "i_b", "f_w", "f_b",
                 "ln2_g", "ln2_b", "fc_w", "fc_b"]


# ---------------- forward: embedding glue + one fused pallas_call ----------------
def bert_classifier(packed, input_ids, attention_mask):
    B, S = input_ids.shape

    # Embedding lookup + adds are XLA glue (data-dependent gather).
    emb = (jnp.take(packed["word_emb"], input_ids, axis=0)
           + packed["pos_emb"][:S][None, :, :]
           + packed["type_emb"][0][None, None, :]).astype(jnp.float32)     # (B, S, H)

    # Additive key mask, HF-style: 0 for attended, -1e9 for masked.
    add_mask = ((1.0 - attention_mask.astype(jnp.float32)) * -1e9).reshape(B, 1, S)

    weights = [packed[n] for n in _WEIGHT_ORDER]

    def resident(x):  # whole weight resident in VMEM across all grid steps
        nd = x.ndim
        return pl.BlockSpec(x.shape, lambda b, _nd=nd: (0,) * _nd)

    out = pl.pallas_call(
        _bert_kernel,
        out_shape=jax.ShapeDtypeStruct((B, S, LANE), jnp.float32),
        grid=(B,),
        in_specs=[pl.BlockSpec((1, S, HIDDEN), lambda b: (b, 0, 0)),       # per-batch embeddings
                  pl.BlockSpec((1, 1, S), lambda b: (b, 0, 0))]            # per-batch mask
                 + [resident(w) for w in weights],
        out_specs=pl.BlockSpec((1, S, LANE), lambda b: (b, 0, 0)),
        compiler_params=pltpu.CompilerParams(
            dimension_semantics=("parallel",)),                            # 2 TCs on v7x
    )(emb, add_mask, *weights)

    return out[:, 0, :NUM_CLASSES]                                         # CLS logits


if __name__ == "__main__":
    key = jax.random.PRNGKey(0)
    pkey, ikey = jax.random.split(key)
    raw_params = init_params(pkey)
    packed = pack_params(raw_params)        # one-time packing, outside the jitted forward

    B, S = 2, 8
    input_ids = jax.random.randint(ikey, (B, S), 0, VOCAB, dtype=jnp.int32)
    attention_mask = jnp.array([[1, 1, 1, 1, 1, 1, 1, 1],
                                [1, 1, 1, 1, 1, 1, 0, 0]], dtype=jnp.int32)

    fwd = jax.jit(bert_classifier)
    logits = fwd(packed, input_ids, attention_mask)
    jax.block_until_ready(logits)
    assert logits.shape == (B, NUM_CLASSES)
    assert bool(jnp.all(jnp.isfinite(logits)))
    print("KERNEL_OK")
</pallas_src>

<mosaic_0001>
module attributes {stable_mosaic.version = 11 : i64} {
  func.func @_bert_kernel(%arg0: i32, %arg1: memref<1x8x32xf32, #tpu.memory_space<vmem>>, %arg2: memref<1x1x8xf32, #tpu.memory_space<vmem>>, %arg3: memref<1x32xf32, #tpu.memory_space<vmem>>, %arg4: memref<1x32xf32, #tpu.memory_space<vmem>>, %arg5: memref<2x2x32x48xbf16, #tpu.memory_space<vmem>>, %arg6: memref<2x2x1x48xf32, #tpu.memory_space<vmem>>, %arg7: memref<2x2x16x32xbf16, #tpu.memory_space<vmem>>, %arg8: memref<2x1x32xf32, #tpu.memory_space<vmem>>, %arg9: memref<2x1x32xf32, #tpu.memory_space<vmem>>, %arg10: memref<2x1x32xf32, #tpu.memory_space<vmem>>, %arg11: memref<2x32x64xbf16, #tpu.memory_space<vmem>>, %arg12: memref<2x1x64xf32, #tpu.memory_space<vmem>>, %arg13: memref<2x64x32xbf16, #tpu.memory_space<vmem>>, %arg14: memref<2x1x32xf32, #tpu.memory_space<vmem>>, %arg15: memref<2x1x32xf32, #tpu.memory_space<vmem>>, %arg16: memref<2x1x32xf32, #tpu.memory_space<vmem>>, %arg17: memref<32x128xbf16, #tpu.memory_space<vmem>>, %arg18: memref<1x128xf32, #tpu.memory_space<vmem>>, %arg19: memref<1x8x128xf32, #tpu.memory_space<vmem>>) attributes {dimension_semantics = [#tpu.dimension_semantics<parallel>], iteration_bounds = array<i64: 2>, scalar_prefetch = 0 : i64, scratch_operands = 0 : i64, tpu.core_type = #tpu.core_type<tc>, window_params = [{transform_indices = @transform_0, window_bounds = array<i64: 1, 8, 32>}, {transform_indices = @transform_1, window_bounds = array<i64: 1, 1, 8>}, {pipeline_mode = #tpu.pipeline_mode<synchronous>, transform_indices = @transform_2, window_bounds = array<i64: 1, 32>}, {pipeline_mode = #tpu.pipeline_mode<synchronous>, transform_indices = @transform_3, window_bounds = array<i64: 1, 32>}, {pipeline_mode = #tpu.pipeline_mode<synchronous>, transform_indices = @transform_4, window_bounds = array<i64: 2, 2, 32, 48>}, {pipeline_mode = #tpu.pipeline_mode<synchronous>, transform_indices = @transform_5, window_bounds = array<i64: 2, 2, 1, 48>}, {pipeline_mode = #tpu.pipeline_mode<synchronous>, transform_indices = @transform_6, window_bounds = array<i64: 2, 2, 16, 32>}, {pipeline_mode = #tpu.pipeline_mode<synchronous>, transform_indices = @transform_7, window_bounds = array<i64: 2, 1, 32>}, {pipeline_mode = #tpu.pipeline_mode<synchronous>, transform_indices = @transform_8, window_bounds = array<i64: 2, 1, 32>}, {pipeline_mode = #tpu.pipeline_mode<synchronous>, transform_indices = @transform_9, window_bounds = array<i64: 2, 1, 32>}, {pipeline_mode = #tpu.pipeline_mode<synchronous>, transform_indices = @transform_10, window_bounds = array<i64: 2, 32, 64>}, {pipeline_mode = #tpu.pipeline_mode<synchronous>, transform_indices = @transform_11, window_bounds = array<i64: 2, 1, 64>}, {pipeline_mode = #tpu.pipeline_mode<synchronous>, transform_indices = @transform_12, window_bounds = array<i64: 2, 64, 32>}, {pipeline_mode = #tpu.pipeline_mode<synchronous>, transform_indices = @transform_13, window_bounds = array<i64: 2, 1, 32>}, {pipeline_mode = #tpu.pipeline_mode<synchronous>, transform_indices = @transform_14, window_bounds = array<i64: 2, 1, 32>}, {pipeline_mode = #tpu.pipeline_mode<synchronous>, transform_indices = @transform_15, window_bounds = array<i64: 2, 1, 32>}, {pipeline_mode = #tpu.pipeline_mode<synchronous>, transform_indices = @transform_16, window_bounds = array<i64: 32, 128>}, {pipeline_mode = #tpu.pipeline_mode<synchronous>, transform_indices = @transform_17, window_bounds = array<i64: 1, 128>}, {transform_indices = @transform_18, window_bounds = array<i64: 1, 8, 128>}]} {
    %c0 = arith.constant 0 : index
    %c0_0 = arith.constant 0 : index
    %c0_1 = arith.constant 0 : index
    %0 = vector.load %arg1[%c0, %c0_0, %c0_1] : memref<1x8x32xf32, #tpu.memory_space<vmem>>, vector<1x8x32xf32>
    %1 = vector.shape_cast %0 : vector<1x8x32xf32> to vector<8x32xf32>
    %c0_2 = arith.constant 0 : index
    %c0_3 = arith.constant 0 : index
    %2 = vector.load %arg3[%c0_2, %c0_3] : memref<1x32xf32, #tpu.memory_space<vmem>>, vector<1x32xf32>
    %c0_4 = arith.constant 0 : index
    %c0_5 = arith.constant 0 : index
    %3 = vector.load %arg4[%c0_4, %c0_5] : memref<1x32xf32, #tpu.memory_space<vmem>>, vector<1x32xf32>
    %cst = arith.constant dense<0.000000e+00> : vector<8xf32>
    %4 = vector.multi_reduction <add>, %1, %cst [1] : vector<8x32xf32> to vector<8xf32>
    %5 = vector.shape_cast %4 : vector<8xf32> to vector<8x1xf32>
    %cst_6 = arith.constant 3.200000e+01 : f32
    %6 = vector.broadcast %cst_6 : f32 to vector<8x1xf32>
    %7 = arith.divf %5, %6 : vector<8x1xf32>
    %8 = vector.broadcast %7 : vector<8x1xf32> to vector<8x32xf32>
    %9 = arith.subf %1, %8 : vector<8x32xf32>
    %10 = arith.mulf %9, %9 : vector<8x32xf32>
    %cst_7 = arith.constant dense<0.000000e+00> : vector<8xf32>
    %11 = vector.multi_reduction <add>, %10, %cst_7 [1] : vector<8x32xf32> to vector<8xf32>
    %12 = vector.shape_cast %11 : vector<8xf32> to vector<8x1xf32>
    %cst_8 = arith.constant 3.200000e+01 : f32
    %13 = vector.broadcast %cst_8 : f32 to vector<8x1xf32>
    %14 = arith.divf %12, %13 : vector<8x1xf32>
    %15 = vector.broadcast %7 : vector<8x1xf32> to vector<8x32xf32>
    %16 = arith.subf %1, %15 : vector<8x32xf32>
    %cst_9 = arith.constant 9.99999996E-13 : f32
    %17 = vector.broadcast %cst_9 : f32 to vector<8x1xf32>
    %18 = arith.addf %14, %17 : vector<8x1xf32>
    %19 = math.rsqrt %18 : vector<8x1xf32>
    %20 = vector.broadcast %19 : vector<8x1xf32> to vector<8x32xf32>
    %21 = arith.mulf %16, %20 : vector<8x32xf32>
    %22 = vector.broadcast %2 : vector<1x32xf32> to vector<8x32xf32>
    %23 = arith.mulf %21, %22 : vector<8x32xf32>
    %24 = vector.broadcast %3 : vector<1x32xf32> to vector<8x32xf32>
    %25 = arith.addf %23, %24 : vector<8x32xf32>
    %c0_10 = arith.constant 0 : index
    %c0_11 = arith.constant 0 : index
    %c0_12 = arith.constant 0 : index
    %26 = vector.load %arg2[%c0_10, %c0_11, %c0_12] : memref<1x1x8xf32, #tpu.memory_space<vmem>>, vector<1x1x8xf32>
    %27 = vector.shape_cast %26 : vector<1x1x8xf32> to vector<1x8xf32>
    %28 = vector.shape_cast %27 : vector<1x8xf32> to vector<1x1x8xf32>
    %29 = vector.shape_cast %28 : vector<1x1x8xf32> to vector<1x1x8xf32>
    %30 = vector.broadcast %29 : vector<1x1x8xf32> to vector<2x8x8xf32>
    %31 = arith.truncf %25 : vector<8x32xf32> to vector<8x32xbf16>
    %32 = vector.shape_cast %31 : vector<8x32xbf16> to vector<1x8x32xbf16>
    %33 = vector.shape_cast %32 : vector<1x8x32xbf16> to vector<1x8x32xbf16>
    %34 = vector.broadcast %33 : vector<1x8x32xbf16> to vector<2x8x32xbf16>
    %c0_13 = arith.constant 0 : index
    %c0_14 = arith.constant 0 : index
    %c0_15 = arith.constant 0 : index
    %c0_16 = arith.constant 0 : index
    %35 = vector.load %arg5[%c0_13, %c0_14, %c0_15, %c0_16] : memref<2x2x32x48xbf16, #tpu.memory_space<vmem>>, vector<1x2x32x48xbf16>
    %36 = vector.shape_cast %35 : vector<1x2x32x48xbf16> to vector<2x32x48xbf16>
    "tpu.trace_start"() <{level = 10 : i32, message = "hsd,hdf->hsf"}> : () -> ()
    %cst_17 = arith.constant dense<0.000000e+00> : vector<2x8x48xf32>
    %37 = tpu.matmul %34, %36, %cst_17 {dimension_numbers = #tpu.dot_dimension_numbers<[2], [1], [1], [2], [0, 0, 0, 1, 1, 2], [0], [0]>} : vector<2x8x32xbf16>, vector<2x32x48xbf16>, vector<2x8x48xf32> -> vector<2x8x48xf32>
    "tpu.trace_stop"() : () -> ()
    %c0_18 = arith.constant 0 : index
    %c0_19 = arith.constant 0 : index
    %c0_20 = arith.constant 0 : index
    %c0_21 = arith.constant 0 : index
    %38 = vector.load %arg6[%c0_18, %c0_19, %c0_20, %c0_21] : memref<2x2x1x48xf32, #tpu.memory_space<vmem>>, vector<1x2x1x48xf32>
    %39 = vector.shape_cast %38 : vector<1x2x1x48xf32> to vector<2x1x48xf32>
    %40 = vector.broadcast %39 : vector<2x1x48xf32> to vector<2x8x48xf32>
    %41 = arith.addf %37, %40 : vector<2x8x48xf32>
    %42 = vector.extract_strided_slice %41 {offsets = [0, 0, 0], sizes = [2, 8, 16], strides = [1, 1, 1]} : vector<2x8x48xf32> to vector<2x8x16xf32>
    %43 = vector.extract_strided_slice %41 {offsets = [0, 0, 16], sizes = [2, 8, 16], strides = [1, 1, 1]} : vector<2x8x48xf32> to vector<2x8x16xf32>
    %44 = vector.extract_strided_slice %41 {offsets = [0, 0, 32], sizes = [2, 8, 16], strides = [1, 1, 1]} : vector<2x8x48xf32> to vector<2x8x16xf32>
    %45 = arith.truncf %42 : vector<2x8x16xf32> to vector<2x8x16xbf16>
    %46 = arith.truncf %43 : vector<2x8x16xf32> to vector<2x8x16xbf16>
    "tpu.trace_start"() <{level = 10 : i32, message = "hqd,hkd->hqk"}> : () -> ()
    %cst_22 = arith.constant dense<0.000000e+00> : vector<2x8x8xf32>
    %47 = tpu.matmul %45, %46, %cst_22 {dimension_numbers = #tpu.dot_dimension_numbers<[2], [2], [1], [1], [0, 0, 0, 1, 1, 1], [0], [0]>} : vector<2x8x16xbf16>, vector<2x8x16xbf16>, vector<2x8x8xf32> -> vector<2x8x8xf32>
    "tpu.trace_stop"() : () -> ()
    %cst_23 = arith.constant 2.500000e-01 : f32
    %48 = vector.broadcast %cst_23 : f32 to vector<2x8x8xf32>
    %49 = arith.mulf %47, %48 : vector<2x8x8xf32>
    %50 = arith.addf %49, %30 : vector<2x8x8xf32>
    %51 = math.exp %50 : vector<2x8x8xf32>
    %cst_24 = arith.constant dense<0.000000e+00> : vector<2x8xf32>
    %52 = vector.multi_reduction <add>, %51, %cst_24 [2] : vector<2x8x8xf32> to vector<2x8xf32>
    %53 = vector.shape_cast %52 : vector<2x8xf32> to vector<2x8x1xf32>
    %54 = tpu.reciprocal %53 {approx = true} : vector<2x8x1xf32> -> vector<2x8x1xf32>
    %55 = vector.broadcast %54 : vector<2x8x1xf32> to vector<2x8x8xf32>
    %56 = arith.mulf %51, %55 : vector<2x8x8xf32>
    %57 = arith.truncf %56 : vector<2x8x8xf32> to vector<2x8x8xbf16>
    %58 = arith.truncf %44 : vector<2x8x16xf32> to vector<2x8x16xbf16>
    "tpu.trace_start"() <{level = 10 : i32, message = "hqk,hkd->hqd"}> : () -> ()
    %cst_25 = arith.constant dense<0.000000e+00> : vector<2x8x16xf32>
    %59 = tpu.matmul %57, %58, %cst_25 {dimension_numbers = #tpu.dot_dimension_numbers<[2], [1], [1], [2], [0, 0, 0, 1, 1, 2], [0], [0]>} : vector<2x8x8xbf16>, vector<2x8x16xbf16>, vector<2x8x16xf32> -> vector<2x8x16xf32>
    "tpu.trace_stop"() : () -> ()
    %60 = arith.truncf %59 : vector<2x8x16xf32> to vector<2x8x16xbf16>
    %c0_26 = arith.constant 0 : index
    %c0_27 = arith.constant 0 : index
    %c0_28 = arith.constant 0 : index
    %c0_29 = arith.constant 0 : index
    %61 = vector.load %arg7[%c0_26, %c0_27, %c0_28, %c0_29] : memref<2x2x16x32xbf16, #tpu.memory_space<vmem>>, vector<1x2x16x32xbf16>
    %62 = vector.shape_cast %61 : vector<1x2x16x32xbf16> to vector<2x16x32xbf16>
    "tpu.trace_start"() <{level = 10 : i32, message = "hsd,hdo->hso"}> : () -> ()
    %cst_30 = arith.constant dense<0.000000e+00> : vector<2x8x32xf32>
    %63 = tpu.matmul %60, %62, %cst_30 {dimension_numbers = #tpu.dot_dimension_numbers<[2], [1], [1], [2], [0, 0, 0, 1, 1, 2], [0], [0]>} : vector<2x8x16xbf16>, vector<2x16x32xbf16>, vector<2x8x32xf32> -> vector<2x8x32xf32>
    "tpu.trace_stop"() : () -> ()
    %cst_31 = arith.constant dense<0.000000e+00> : vector<8x32xf32>
    %64 = vector.multi_reduction <add>, %63, %cst_31 [0] : vector<2x8x32xf32> to vector<8x32xf32>
    %c0_32 = arith.constant 0 : index
    %c0_33 = arith.constant 0 : index
    %c0_34 = arith.constant 0 : index
    %65 = vector.load %arg8[%c0_32, %c0_33, %c0_34] : memref<2x1x32xf32, #tpu.memory_space<vmem>>, vector<1x1x32xf32>
    %66 = vector.shape_cast %65 : vector<1x1x32xf32> to vector<1x32xf32>
    %67 = vector.broadcast %66 : vector<1x32xf32> to vector<8x32xf32>
    %68 = arith.addf %64, %67 : vector<8x32xf32>
    %69 = arith.addf %25, %68 : vector<8x32xf32>
    %c0_35 = arith.constant 0 : index
    %c0_36 = arith.constant 0 : index
    %c0_37 = arith.constant 0 : index
    %70 = vector.load %arg9[%c0_35, %c0_36, %c0_37] : memref<2x1x32xf32, #tpu.memory_space<vmem>>, vector<1x1x32xf32>
    %71 = vector.shape_cast %70 : vector<1x1x32xf32> to vector<1x32xf32>
    %c0_38 = arith.constant 0 : index
    %c0_39 = arith.constant 0 : index
    %c0_40 = arith.constant 0 : index
    %72 = vector.load %arg10[%c0_38, %c0_39, %c0_40] : memref<2x1x32xf32, #tpu.memory_space<vmem>>, vector<1x1x32xf32>
    %73 = vector.shape_cast %72 : vector<1x1x32xf32> to vector<1x32xf32>
    %cst_41 = arith.constant dense<0.000000e+00> : vector<8xf32>
    %74 = vector.multi_reduction <add>, %69, %cst_41 [1] : vector<8x32xf32> to vector<8xf32>
    %75 = vector.shape_cast %74 : vector<8xf32> to vector<8x1xf32>
    %cst_42 = arith.constant 3.200000e+01 : f32
    %76 = vector.broadcast %cst_42 : f32 to vector<8x1xf32>
    %77 = arith.divf %75, %76 : vector<8x1xf32>
    %78 = vector.broadcast %77 : vector<8x1xf32> to vector<8x32xf32>
    %79 = arith.subf %69, %78 : vector<8x32xf32>
    %80 = arith.mulf %79, %79 : vector<8x32xf32>
    %cst_43 = arith.constant dense<0.000000e+00> : vector<8xf32>
    %81 = vector.multi_reduction <add>, %80, %cst_43 [1] : vector<8x32xf32> to vector<8xf32>
    %82 = vector.shape_cast %81 : vector<8xf32> to vector<8x1xf32>
    %cst_44 = arith.constant 3.200000e+01 : f32
    %83 = vector.broadcast %cst_44 : f32 to vector<8x1xf32>
    %84 = arith.divf %82, %83 : vector<8x1xf32>
    %85 = vector.broadcast %77 : vector<8x1xf32> to vector<8x32xf32>
    %86 = arith.subf %69, %85 : vector<8x32xf32>
    %cst_45 = arith.constant 9.99999996E-13 : f32
    %87 = vector.broadcast %cst_45 : f32 to vector<8x1xf32>
    %88 = arith.addf %84, %87 : vector<8x1xf32>
    %89 = math.rsqrt %88 : vector<8x1xf32>
    %90 = vector.broadcast %89 : vector<8x1xf32> to vector<8x32xf32>
    %91 = arith.mulf %86, %90 : vector<8x32xf32>
    %92 = vector.broadcast %71 : vector<1x32xf32> to vector<8x32xf32>
    %93 = arith.mulf %91, %92 : vector<8x32xf32>
    %94 = vector.broadcast %73 : vector<1x32xf32> to vector<8x32xf32>
    %95 = arith.addf %93, %94 : vector<8x32xf32>
    %c0_46 = arith.constant 0 : index
    %c0_47 = arith.constant 0 : index
    %c0_48 = arith.constant 0 : index
    %96 = vector.load %arg11[%c0_46, %c0_47, %c0_48] : memref<2x32x64xbf16, #tpu.memory_space<vmem>>, vector<1x32x64xbf16>
    %97 = vector.shape_cast %96 : vector<1x32x64xbf16> to vector<32x64xbf16>
    %98 = arith.truncf %95 : vector<8x32xf32> to vector<8x32xbf16>
    %cst_49 = arith.constant dense<0.000000e+00> : vector<8x64xf32>
    %99 = tpu.matmul %98, %97, %cst_49 {dimension_numbers = #tpu.dot_dimension_numbers<[1], [0], [0], [1], [0, 0, 1, 1], [], []>} : vector<8x32xbf16>, vector<32x64xbf16>, vector<8x64xf32> -> vector<8x64xf32>
    %c0_50 = arith.constant 0 : index
    %c0_51 = arith.constant 0 : index
    %c0_52 = arith.constant 0 : index
    %100 = vector.load %arg12[%c0_50, %c0_51, %c0_52] : memref<2x1x64xf32, #tpu.memory_space<vmem>>, vector<1x1x64xf32>
    %101 = vector.shape_cast %100 : vector<1x1x64xf32> to vector<1x64xf32>
    %102 = vector.broadcast %101 : vector<1x64xf32> to vector<8x64xf32>
    %103 = arith.addf %99, %102 : vector<8x64xf32>
    %104 = arith.mulf %103, %103 : vector<8x64xf32>
    %105 = arith.mulf %103, %104 : vector<8x64xf32>
    %cst_53 = arith.constant 4.471500e-02 : f32
    %106 = vector.broadcast %cst_53 : f32 to vector<8x64xf32>
    %107 = arith.mulf %106, %105 : vector<8x64xf32>
    %108 = arith.addf %103, %107 : vector<8x64xf32>
    %cst_54 = arith.constant 0.797884583 : f32
    %109 = vector.broadcast %cst_54 : f32 to vector<8x64xf32>
    %110 = arith.mulf %109, %108 : vector<8x64xf32>
    %111 = math.tanh %110 : vector<8x64xf32>
    %cst_55 = arith.constant 1.000000e+00 : f32
    %112 = vector.broadcast %cst_55 : f32 to vector<8x64xf32>
    %113 = arith.addf %112, %111 : vector<8x64xf32>
    %cst_56 = arith.constant 5.000000e-01 : f32
    %114 = vector.broadcast %cst_56 : f32 to vector<8x64xf32>
    %115 = arith.mulf %114, %113 : vector<8x64xf32>
    %116 = arith.mulf %103, %115 : vector<8x64xf32>
    %c0_57 = arith.constant 0 : index
    %c0_58 = arith.constant 0 : index
    %c0_59 = arith.constant 0 : index
    %117 = vector.load %arg13[%c0_57, %c0_58, %c0_59] : memref<2x64x32xbf16, #tpu.memory_space<vmem>>, vector<1x64x32xbf16>
    %118 = vector.shape_cast %117 : vector<1x64x32xbf16> to vector<64x32xbf16>
    %119 = arith.truncf %116 : vector<8x64xf32> to vector<8x64xbf16>
    %cst_60 = arith.constant dense<0.000000e+00> : vector<8x32xf32>
    %120 = tpu.matmul %119, %118, %cst_60 {dimension_numbers = #tpu.dot_dimension_numbers<[1], [0], [0], [1], [0, 0, 1, 1], [], []>} : vector<8x64xbf16>, vector<64x32xbf16>, vector<8x32xf32> -> vector<8x32xf32>
    %c0_61 = arith.constant 0 : index
    %c0_62 = arith.constant 0 : index
    %c0_63 = arith.constant 0 : index
    %121 = vector.load %arg14[%c0_61, %c0_62, %c0_63] : memref<2x1x32xf32, #tpu.memory_space<vmem>>, vector<1x1x32xf32>
    %122 = vector.shape_cast %121 : vector<1x1x32xf32> to vector<1x32xf32>
    %123 = vector.broadcast %122 : vector<1x32xf32> to vector<8x32xf32>
    %124 = arith.addf %120, %123 : vector<8x32xf32>
    %125 = arith.addf %95, %124 : vector<8x32xf32>
    %c0_64 = arith.constant 0 : index
    %c0_65 = arith.constant 0 : index
    %c0_66 = arith.constant 0 : index
    %126 = vector.load %arg15[%c0_64, %c0_65, %c0_66] : memref<2x1x32xf32, #tpu.memory_space<vmem>>, vector<1x1x32xf32>
    %127 = vector.shape_cast %126 : vector<1x1x32xf32> to vector<1x32xf32>
    %c0_67 = arith.constant 0 : index
    %c0_68 = arith.constant 0 : index
    %c0_69 = arith.constant 0 : index
    %128 = vector.load %arg16[%c0_67, %c0_68, %c0_69] : memref<2x1x32xf32, #tpu.memory_space<vmem>>, vector<1x1x32xf32>
    %129 = vector.shape_cast %128 : vector<1x1x32xf32> to vector<1x32xf32>
    %cst_70 = arith.constant dense<0.000000e+00> : vector<8xf32>
    %130 = vector.multi_reduction <add>, %125, %cst_70 [1] : vector<8x32xf32> to vector<8xf32>
    %131 = vector.shape_cast %130 : vector<8xf32> to vector<8x1xf32>
    %cst_71 = arith.constant 3.200000e+01 : f32
    %132 = vector.broadcast %cst_71 : f32 to vector<8x1xf32>
    %133 = arith.divf %131, %132 : vector<8x1xf32>
    %134 = vector.broadcast %133 : vector<8x1xf32> to vector<8x32xf32>
    %135 = arith.subf %125, %134 : vector<8x32xf32>
    %136 = arith.mulf %135, %135 : vector<8x32xf32>
    %cst_72 = arith.constant dense<0.000000e+00> : vector<8xf32>
    %137 = vector.multi_reduction <add>, %136, %cst_72 [1] : vector<8x32xf32> to vector<8xf32>
    %138 = vector.shape_cast %137 : vector<8xf32> to vector<8x1xf32>
    %cst_73 = arith.constant 3.200000e+01 : f32
    %139 = vector.broadcast %cst_73 : f32 to vector<8x1xf32>
    %140 = arith.divf %138, %139 : vector<8x1xf32>
    %141 = vector.broadcast %133 : vector<8x1xf32> to vector<8x32xf32>
    %142 = arith.subf %125, %141 : vector<8x32xf32>
    %cst_74 = arith.constant 9.99999996E-13 : f32
    %143 = vector.broadcast %cst_74 : f32 to vector<8x1xf32>
    %144 = arith.addf %140, %143 : vector<8x1xf32>
    %145 = math.rsqrt %144 : vector<8x1xf32>
    %146 = vector.broadcast %145 : vector<8x1xf32> to vector<8x32xf32>
    %147 = arith.mulf %142, %146 : vector<8x32xf32>
    %148 = vector.broadcast %127 : vector<1x32xf32> to vector<8x32xf32>
    %149 = arith.mulf %147, %148 : vector<8x32xf32>
    %150 = vector.broadcast %129 : vector<1x32xf32> to vector<8x32xf32>
    %151 = arith.addf %149, %150 : vector<8x32xf32>
    %152 = arith.truncf %151 : vector<8x32xf32> to vector<8x32xbf16>
    %153 = vector.shape_cast %152 : vector<8x32xbf16> to vector<1x8x32xbf16>
    %154 = vector.shape_cast %153 : vector<1x8x32xbf16> to vector<1x8x32xbf16>
    %155 = vector.broadcast %154 : vector<1x8x32xbf16> to vector<2x8x32xbf16>
    %c1 = arith.constant 1 : index
    %c0_75 = arith.constant 0 : index
    %c0_76 = arith.constant 0 : index
    %c0_77 = arith.constant 0 : index
    %156 = vector.load %arg5[%c1, %c0_75, %c0_76, %c0_77] : memref<2x2x32x48xbf16, #tpu.memory_space<vmem>>, vector<1x2x32x48xbf16>
    %157 = vector.shape_cast %156 : vector<1x2x32x48xbf16> to vector<2x32x48xbf16>
    "tpu.trace_start"() <{level = 10 : i32, message = "hsd,hdf->hsf"}> : () -> ()
    %cst_78 = arith.constant dense<0.000000e+00> : vector<2x8x48xf32>
    %158 = tpu.matmul %155, %157, %cst_78 {dimension_numbers = #tpu.dot_dimension_numbers<[2], [1], [1], [2], [0, 0, 0, 1, 1, 2], [0], [0]>} : vector<2x8x32xbf16>, vector<2x32x48xbf16>, vector<2x8x48xf32> -> vector<2x8x48xf32>
    "tpu.trace_stop"() : () -> ()
    %c1_79 = arith.constant 1 : index
    %c0_80 = arith.constant 0 : index
    %c0_81 = arith.constant 0 : index
    %c0_82 = arith.constant 0 : index
    %159 = vector.load %arg6[%c1_79, %c0_80, %c0_81, %c0_82] : memref<2x2x1x48xf32, #tpu.memory_space<vmem>>, vector<1x2x1x48xf32>
    %160 = vector.shape_cast %159 : vector<1x2x1x48xf32> to vector<2x1x48xf32>
    %161 = vector.broadcast %160 : vector<2x1x48xf32> to vector<2x8x48xf32>
    %162 = arith.addf %158, %161 : vector<2x8x48xf32>
    %163 = vector.extract_strided_slice %162 {offsets = [0, 0, 0], sizes = [2, 8, 16], strides = [1, 1, 1]} : vector<2x8x48xf32> to vector<2x8x16xf32>
    %164 = vector.extract_strided_slice %162 {offsets = [0, 0, 16], sizes = [2, 8, 16], strides = [1, 1, 1]} : vector<2x8x48xf32> to vector<2x8x16xf32>
    %165 = vector.extract_strided_slice %162 {offsets = [0, 0, 32], sizes = [2, 8, 16], strides = [1, 1, 1]} : vector<2x8x48xf32> to vector<2x8x16xf32>
    %166 = arith.truncf %163 : vector<2x8x16xf32> to vector<2x8x16xbf16>
    %167 = arith.truncf %164 : vector<2x8x16xf32> to vector<2x8x16xbf16>
    "tpu.trace_start"() <{level = 10 : i32, message = "hqd,hkd->hqk"}> : () -> ()
    %cst_83 = arith.constant dense<0.000000e+00> : vector<2x8x8xf32>
    %168 = tpu.matmul %166, %167, %cst_83 {dimension_numbers = #tpu.dot_dimension_numbers<[2], [2], [1], [1], [0, 0, 0, 1, 1, 1], [0], [0]>} : vector<2x8x16xbf16>, vector<2x8x16xbf16>, vector<2x8x8xf32> -> vector<2x8x8xf32>
    "tpu.trace_stop"() : () -> ()
    %cst_84 = arith.constant 2.500000e-01 : f32
    %169 = vector.broadcast %cst_84 : f32 to vector<2x8x8xf32>
    %170 = arith.mulf %168, %169 : vector<2x8x8xf32>
    %171 = arith.addf %170, %30 : vector<2x8x8xf32>
    %172 = math.exp %171 : vector<2x8x8xf32>
    %cst_85 = arith.constant dense<0.000000e+00> : vector<2x8xf32>
    %173 = vector.multi_reduction <add>, %172, %cst_85 [2] : vector<2x8x8xf32> to vector<2x8xf32>
    %174 = vector.shape_cast %173 : vector<2x8xf32> to vector<2x8x1xf32>
    %175 = tpu.reciprocal %174 {approx = true} : vector<2x8x1xf32> -> vector<2x8x1xf32>
    %176 = vector.broadcast %175 : vector<2x8x1xf32> to vector<2x8x8xf32>
    %177 = arith.mulf %172, %176 : vector<2x8x8xf32>
    %178 = arith.truncf %177 : vector<2x8x8xf32> to vector<2x8x8xbf16>
    %179 = arith.truncf %165 : vector<2x8x16xf32> to vector<2x8x16xbf16>
    "tpu.trace_start"() <{level = 10 : i32, message = "hqk,hkd->hqd"}> : () -> ()
    %cst_86 = arith.constant dense<0.000000e+00> : vector<2x8x16xf32>
    %180 = tpu.matmul %178, %179, %cst_86 {dimension_numbers = #tpu.dot_dimension_numbers<[2], [1], [1], [2], [0, 0, 0, 1, 1, 2], [0], [0]>} : vector<2x8x8xbf16>, vector<2x8x16xbf16>, vector<2x8x16xf32> -> vector<2x8x16xf32>
    "tpu.trace_stop"() : () -> ()
    %181 = arith.truncf %180 : vector<2x8x16xf32> to vector<2x8x16xbf16>
    %c1_87 = arith.constant 1 : index
    %c0_88 = arith.constant 0 : index
    %c0_89 = arith.constant 0 : index
    %c0_90 = arith.constant 0 : index
    %182 = vector.load %arg7[%c1_87, %c0_88, %c0_89, %c0_90] : memref<2x2x16x32xbf16, #tpu.memory_space<vmem>>, vector<1x2x16x32xbf16>
    %183 = vector.shape_cast %182 : vector<1x2x16x32xbf16> to vector<2x16x32xbf16>
    "tpu.trace_start"() <{level = 10 : i32, message = "hsd,hdo->hso"}> : () -> ()
    %cst_91 = arith.constant dense<0.000000e+00> : vector<2x8x32xf32>
    %184 = tpu.matmul %181, %183, %cst_91 {dimension_numbers = #tpu.dot_dimension_numbers<[2], [1], [1], [2], [0, 0, 0, 1, 1, 2], [0], [0]>} : vector<2x8x16xbf16>, vector<2x16x32xbf16>, vector<2x8x32xf32> -> vector<2x8x32xf32>
    "tpu.trace_stop"() : () -> ()
    %cst_92 = arith.constant dense<0.000000e+00> : vector<8x32xf32>
    %185 = vector.multi_reduction <add>, %184, %cst_92 [0] : vector<2x8x32xf32> to vector<8x32xf32>
    %c1_93 = arith.constant 1 : index
    %c0_94 = arith.constant 0 : index
    %c0_95 = arith.constant 0 : index
    %186 = vector.load %arg8[%c1_93, %c0_94, %c0_95] : memref<2x1x32xf32, #tpu.memory_space<vmem>>, vector<1x1x32xf32>
    %187 = vector.shape_cast %186 : vector<1x1x32xf32> to vector<1x32xf32>
    %188 = vector.broadcast %187 : vector<1x32xf32> to vector<8x32xf32>
    %189 = arith.addf %185, %188 : vector<8x32xf32>
    %190 = arith.addf %151, %189 : vector<8x32xf32>
    %c1_96 = arith.constant 1 : index
    %c0_97 = arith.constant 0 : index
    %c0_98 = arith.constant 0 : index
    %191 = vector.load %arg9[%c1_96, %c0_97, %c0_98] : memref<2x1x32xf32, #tpu.memory_space<vmem>>, vector<1x1x32xf32>
    %192 = vector.shape_cast %191 : vector<1x1x32xf32> to vector<1x32xf32>
    %c1_99 = arith.constant 1 : index
    %c0_100 = arith.constant 0 : index
    %c0_101 = arith.constant 0 : index
    %193 = vector.load %arg10[%c1_99, %c0_100, %c0_101] : memref<2x1x32xf32, #tpu.memory_space<vmem>>, vector<1x1x32xf32>
    %194 = vector.shape_cast %193 : vector<1x1x32xf32> to vector<1x32xf32>
    %cst_102 = arith.constant dense<0.000000e+00> : vector<8xf32>
    %195 = vector.multi_reduction <add>, %190, %cst_102 [1] : vector<8x32xf32> to vector<8xf32>
    %196 = vector.shape_cast %195 : vector<8xf32> to vector<8x1xf32>
    %cst_103 = arith.constant 3.200000e+01 : f32
    %197 = vector.broadcast %cst_103 : f32 to vector<8x1xf32>
    %198 = arith.divf %196, %197 : vector<8x1xf32>
    %199 = vector.broadcast %198 : vector<8x1xf32> to vector<8x32xf32>
    %200 = arith.subf %190, %199 : vector<8x32xf32>
    %201 = arith.mulf %200, %200 : vector<8x32xf32>
    %cst_104 = arith.constant dense<0.000000e+00> : vector<8xf32>
    %202 = vector.multi_reduction <add>, %201, %cst_104 [1] : vector<8x32xf32> to vector<8xf32>
    %203 = vector.shape_cast %202 : vector<8xf32> to vector<8x1xf32>
    %cst_105 = arith.constant 3.200000e+01 : f32
    %204 = vector.broadcast %cst_105 : f32 to vector<8x1xf32>
    %205 = arith.divf %203, %204 : vector<8x1xf32>
    %206 = vector.broadcast %198 : vector<8x1xf32> to vector<8x32xf32>
    %207 = arith.subf %190, %206 : vector<8x32xf32>
    %cst_106 = arith.constant 9.99999996E-13 : f32
    %208 = vector.broadcast %cst_106 : f32 to vector<8x1xf32>
    %209 = arith.addf %205, %208 : vector<8x1xf32>
    %210 = math.rsqrt %209 : vector<8x1xf32>
    %211 = vector.broadcast %210 : vector<8x1xf32> to vector<8x32xf32>
    %212 = arith.mulf %207, %211 : vector<8x32xf32>
    %213 = vector.broadcast %192 : vector<1x32xf32> to vector<8x32xf32>
    %214 = arith.mulf %212, %213 : vector<8x32xf32>
    %215 = vector.broadcast %194 : vector<1x32xf32> to vector<8x32xf32>
    %216 = arith.addf %214, %215 : vector<8x32xf32>
    %c1_107 = arith.constant 1 : index
    %c0_108 = arith.constant 0 : index
    %c0_109 = arith.constant 0 : index
    %217 = vector.load %arg11[%c1_107, %c0_108, %c0_109] : memref<2x32x64xbf16, #tpu.memory_space<vmem>>, vector<1x32x64xbf16>
    %218 = vector.shape_cast %217 : vector<1x32x64xbf16> to vector<32x64xbf16>
    %219 = arith.truncf %216 : vector<8x32xf32> to vector<8x32xbf16>
    %cst_110 = arith.constant dense<0.000000e+00> : vector<8x64xf32>
    %220 = tpu.matmul %219, %218, %cst_110 {dimension_numbers = #tpu.dot_dimension_numbers<[1], [0], [0], [1], [0, 0, 1, 1], [], []>} : vector<8x32xbf16>, vector<32x64xbf16>, vector<8x64xf32> -> vector<8x64xf32>
    %c1_111 = arith.constant 1 : index
    %c0_112 = arith.constant 0 : index
    %c0_113 = arith.constant 0 : index
    %221 = vector.load %arg12[%c1_111, %c0_112, %c0_113] : memref<2x1x64xf32, #tpu.memory_space<vmem>>, vector<1x1x64xf32>
    %222 = vector.shape_cast %221 : vector<1x1x64xf32> to vector<1x64xf32>
    %223 = vector.broadcast %222 : vector<1x64xf32> to vector<8x64xf32>
    %224 = arith.addf %220, %223 : vector<8x64xf32>
    %225 = arith.mulf %224, %224 : vector<8x64xf32>
    %226 = arith.mulf %224, %225 : vector<8x64xf32>
    %cst_114 = arith.constant 4.471500e-02 : f32
    %227 = vector.broadcast %cst_114 : f32 to vector<8x64xf32>
    %228 = arith.mulf %227, %226 : vector<8x64xf32>
    %229 = arith.addf %224, %228 : vector<8x64xf32>
    %cst_115 = arith.constant 0.797884583 : f32
    %230 = vector.broadcast %cst_115 : f32 to vector<8x64xf32>
    %231 = arith.mulf %230, %229 : vector<8x64xf32>
    %232 = math.tanh %231 : vector<8x64xf32>
    %cst_116 = arith.constant 1.000000e+00 : f32
    %233 = vector.broadcast %cst_116 : f32 to vector<8x64xf32>
    %234 = arith.addf %233, %232 : vector<8x64xf32>
    %cst_117 = arith.constant 5.000000e-01 : f32
    %235 = vector.broadcast %cst_117 : f32 to vector<8x64xf32>
    %236 = arith.mulf %235, %234 : vector<8x64xf32>
    %237 = arith.mulf %224, %236 : vector<8x64xf32>
    %c1_118 = arith.constant 1 : index
    %c0_119 = arith.constant 0 : index
    %c0_120 = arith.constant 0 : index
    %238 = vector.load %arg13[%c1_118, %c0_119, %c0_120] : memref<2x64x32xbf16, #tpu.memory_space<vmem>>, vector<1x64x32xbf16>
    %239 = vector.shape_cast %238 : vector<1x64x32xbf16> to vector<64x32xbf16>
    %240 = arith.truncf %237 : vector<8x64xf32> to vector<8x64xbf16>
    %cst_121 = arith.constant dense<0.000000e+00> : vector<8x32xf32>
    %241 = tpu.matmul %240, %239, %cst_121 {dimension_numbers = #tpu.dot_dimension_numbers<[1], [0], [0], [1], [0, 0, 1, 1], [], []>} : vector<8x64xbf16>, vector<64x32xbf16>, vector<8x32xf32> -> vector<8x32xf32>
    %c1_122 = arith.constant 1 : index
    %c0_123 = arith.constant 0 : index
    %c0_124 = arith.constant 0 : index
    %242 = vector.load %arg14[%c1_122, %c0_123, %c0_124] : memref<2x1x32xf32, #tpu.memory_space<vmem>>, vector<1x1x32xf32>
    %243 = vector.shape_cast %242 : vector<1x1x32xf32> to vector<1x32xf32>
    %244 = vector.broadcast %243 : vector<1x32xf32> to vector<8x32xf32>
    %245 = arith.addf %241, %244 : vector<8x32xf32>
    %246 = arith.addf %216, %245 : vector<8x32xf32>
    %c1_125 = arith.constant 1 : index
    %c0_126 = arith.constant 0 : index
    %c0_127 = arith.constant 0 : index
    %247 = vector.load %arg15[%c1_125, %c0_126, %c0_127] : memref<2x1x32xf32, #tpu.memory_space<vmem>>, vector<1x1x32xf32>
    %248 = vector.shape_cast %247 : vector<1x1x32xf32> to vector<1x32xf32>
    %c1_128 = arith.constant 1 : index
    %c0_129 = arith.constant 0 : index
    %c0_130 = arith.constant 0 : index
    %249 = vector.load %arg16[%c1_128, %c0_129, %c0_130] : memref<2x1x32xf32, #tpu.memory_space<vmem>>, vector<1x1x32xf32>
    %250 = vector.shape_cast %249 : vector<1x1x32xf32> to vector<1x32xf32>
    %cst_131 = arith.constant dense<0.000000e+00> : vector<8xf32>
    %251 = vector.multi_reduction <add>, %246, %cst_131 [1] : vector<8x32xf32> to vector<8xf32>
    %252 = vector.shape_cast %251 : vector<8xf32> to vector<8x1xf32>
    %cst_132 = arith.constant 3.200000e+01 : f32
    %253 = vector.broadcast %cst_132 : f32 to vector<8x1xf32>
    %254 = arith.divf %252, %253 : vector<8x1xf32>
    %255 = vector.broadcast %254 : vector<8x1xf32> to vector<8x32xf32>
    %256 = arith.subf %246, %255 : vector<8x32xf32>
    %257 = arith.mulf %256, %256 : vector<8x32xf32>
    %cst_133 = arith.constant dense<0.000000e+00> : vector<8xf32>
    %258 = vector.multi_reduction <add>, %257, %cst_133 [1] : vector<8x32xf32> to vector<8xf32>
    %259 = vector.shape_cast %258 : vector<8xf32> to vector<8x1xf32>
    %cst_134 = arith.constant 3.200000e+01 : f32
    %260 = vector.broadcast %cst_134 : f32 to vector<8x1xf32>
    %261 = arith.divf %259, %260 : vector<8x1xf32>
    %262 = vector.broadcast %254 : vector<8x1xf32> to vector<8x32xf32>
    %263 = arith.subf %246, %262 : vector<8x32xf32>
    %cst_135 = arith.constant 9.99999996E-13 : f32
    %264 = vector.broadcast %cst_135 : f32 to vector<8x1xf32>
    %265 = arith.addf %261, %264 : vector<8x1xf32>
    %266 = math.rsqrt %265 : vector<8x1xf32>
    %267 = vector.broadcast %266 : vector<8x1xf32> to vector<8x32xf32>
    %268 = arith.mulf %263, %267 : vector<8x32xf32>
    %269 = vector.broadcast %248 : vector<1x32xf32> to vector<8x32xf32>
    %270 = arith.mulf %268, %269 : vector<8x32xf32>
    %271 = vector.broadcast %250 : vector<1x32xf32> to vector<8x32xf32>
    %272 = arith.addf %270, %271 : vector<8x32xf32>
    %c0_136 = arith.constant 0 : index
    %c0_137 = arith.constant 0 : index
    %273 = vector.load %arg17[%c0_136, %c0_137] : memref<32x128xbf16, #tpu.memory_space<vmem>>, vector<32x128xbf16>
    %274 = arith.truncf %272 : vector<8x32xf32> to vector<8x32xbf16>
    %cst_138 = arith.constant dense<0.000000e+00> : vector<8x128xf32>
    %275 = tpu.matmul %274, %273, %cst_138 {dimension_numbers = #tpu.dot_dimension_numbers<[1], [0], [0], [1], [0, 0, 1, 1], [], []>} : vector<8x32xbf16>, vector<32x128xbf16>, vector<8x128xf32> -> vector<8x128xf32>
    %c0_139 = arith.constant 0 : index
    %c0_140 = arith.constant 0 : index
    %276 = vector.load %arg18[%c0_139, %c0_140] : memref<1x128xf32, #tpu.memory_space<vmem>>, vector<1x128xf32>
    %277 = vector.broadcast %276 : vector<1x128xf32> to vector<8x128xf32>
    %278 = arith.addf %275, %277 : vector<8x128xf32>
    %c0_141 = arith.constant 0 : index
    %c0_142 = arith.constant 0 : index
    %c0_143 = arith.constant 0 : index
    %279 = vector.load %arg19[%c0_141, %c0_142, %c0_143] : memref<1x8x128xf32, #tpu.memory_space<vmem>>, vector<1x8x128xf32>
    %280 = vector.shape_cast %279 : vector<1x8x128xf32> to vector<8x128xf32>
    %281 = vector.shape_cast %278 : vector<8x128xf32> to vector<1x8x128xf32>
    tpu.vector_store %arg19[%c0_141, %c0_142, %c0_143], %281 {strides = array<i32>} : memref<1x8x128xf32, #tpu.memory_space<vmem>>, vector<1x8x128xf32>,
    return
  }
  func.func @transform_0(%arg0: i32) -> (i32, i32, i32) {
    %c0_i32 = arith.constant 0 : i32
    %c0_i32_0 = arith.constant 0 : i32
    %c0_i32_1 = arith.constant 0 : i32
    return %arg0, %c0_i32, %c0_i32_0 : i32, i32, i32
  }
  func.func @transform_1(%arg0: i32) -> (i32, i32, i32) {
    %c0_i32 = arith.constant 0 : i32
    %c0_i32_0 = arith.constant 0 : i32
    %c0_i32_1 = arith.constant 0 : i32
    return %arg0, %c0_i32, %c0_i32_0 : i32, i32, i32
  }
  func.func @transform_2(%arg0: i32) -> (i32, i32) {
    %c0_i32 = arith.constant 0 : i32
    %c0_i32_0 = arith.constant 0 : i32
    %c0_i32_1 = arith.constant 0 : i32
    return %c0_i32, %c0_i32_0 : i32, i32
  }
  func.func @transform_3(%arg0: i32) -> (i32, i32) {
    %c0_i32 = arith.constant 0 : i32
    %c0_i32_0 = arith.constant 0 : i32
    %c0_i32_1 = arith.constant 0 : i32
    return %c0_i32, %c0_i32_0 : i32, i32
  }
  func.func @transform_4(%arg0: i32) -> (i32, i32, i32, i32) {
    %c0_i32 = arith.constant 0 : i32
    %c0_i32_0 = arith.constant 0 : i32
    %c0_i32_1 = arith.constant 0 : i32
    %c0_i32_2 = arith.constant 0 : i32
    %c0_i32_3 = arith.constant 0 : i32
    return %c0_i32, %c0_i32_0, %c0_i32_1, %c0_i32_2 : i32, i32, i32, i32
  }
  func.func @transform_5(%arg0: i32) -> (i32, i32, i32, i32) {
    %c0_i32 = arith.constant 0 : i32
    %c0_i32_0 = arith.constant 0 : i32
    %c0_i32_1 = arith.constant 0 : i32
    %c0_i32_2 = arith.constant 0 : i32
    %c0_i32_3 = arith.constant 0 : i32
    return %c0_i32, %c0_i32_0, %c0_i32_1, %c0_i32_2 : i32, i32, i32, i32
  }
  func.func @transform_6(%arg0: i32) -> (i32, i32, i32, i32) {
    %c0_i32 = arith.constant 0 : i32
    %c0_i32_0 = arith.constant 0 : i32
    %c0_i32_1 = arith.constant 0 : i32
    %c0_i32_2 = arith.constant 0 : i32
    %c0_i32_3 = arith.constant 0 : i32
    return %c0_i32, %c0_i32_0, %c0_i32_1, %c0_i32_2 : i32, i32, i32, i32
  }
  func.func @transform_7(%arg0: i32) -> (i32, i32, i32) {
    %c0_i32 = arith.constant 0 : i32
    %c0_i32_0 = arith.constant 0 : i32
    %c0_i32_1 = arith.constant 0 : i32
    %c0_i32_2 = arith.constant 0 : i32
    return %c0_i32, %c0_i32_0, %c0_i32_1 : i32, i32, i32
  }
  func.func @transform_8(%arg0: i32) -> (i32, i32, i32) {
    %c0_i32 = arith.constant 0 : i32
    %c0_i32_0 = arith.constant 0 : i32
    %c0_i32_1 = arith.constant 0 : i32
    %c0_i32_2 = arith.constant 0 : i32
    return %c0_i32, %c0_i32_0, %c0_i32_1 : i32, i32, i32
  }
  func.func @transform_9(%arg0: i32) -> (i32, i32, i32) {
    %c0_i32 = arith.constant 0 : i32
    %c0_i32_0 = arith.constant 0 : i32
    %c0_i32_1 = arith.constant 0 : i32
    %c0_i32_2 = arith.constant 0 : i32
    return %c0_i32, %c0_i32_0, %c0_i32_1 : i32, i32, i32
  }
  func.func @transform_10(%arg0: i32) -> (i32, i32, i32) {
    %c0_i32 = arith.constant 0 : i32
    %c0_i32_0 = arith.constant 0 : i32
    %c0_i32_1 = arith.constant 0 : i32
    %c0_i32_2 = arith.constant 0 : i32
    return %c0_i32, %c0_i32_0, %c0_i32_1 : i32, i32, i32
  }
  func.func @transform_11(%arg0: i32) -> (i32, i32, i32) {
    %c0_i32 = arith.constant 0 : i32
    %c0_i32_0 = arith.constant 0 : i32
    %c0_i32_1 = arith.constant 0 : i32
    %c0_i32_2 = arith.constant 0 : i32
    return %c0_i32, %c0_i32_0, %c0_i32_1 : i32, i32, i32
  }
  func.func @transform_12(%arg0: i32) -> (i32, i32, i32) {
    %c0_i32 = arith.constant 0 : i32
    %c0_i32_0 = arith.constant 0 : i32
    %c0_i32_1 = arith.constant 0 : i32
    %c0_i32_2 = arith.constant 0 : i32
    return %c0_i32, %c0_i32_0, %c0_i32_1 : i32, i32, i32
  }
  func.func @transform_13(%arg0: i32) -> (i32, i32, i32) {
    %c0_i32 = arith.constant 0 : i32
    %c0_i32_0 = arith.constant 0 : i32
    %c0_i32_1 = arith.constant 0 : i32
    %c0_i32_2 = arith.constant 0 : i32
    return %c0_i32, %c0_i32_0, %c0_i32_1 : i32, i32, i32
  }
  func.func @transform_14(%arg0: i32) -> (i32, i32, i32) {
    %c0_i32 = arith.constant 0 : i32
    %c0_i32_0 = arith.constant 0 : i32
    %c0_i32_1 = arith.constant 0 : i32
    %c0_i32_2 = arith.constant 0 : i32
    return %c0_i32, %c0_i32_0, %c0_i32_1 : i32, i32, i32
  }
  func.func @transform_15(%arg0: i32) -> (i32, i32, i32) {
    %c0_i32 = arith.constant 0 : i32
    %c0_i32_0 = arith.constant 0 : i32
    %c0_i32_1 = arith.constant 0 : i32
    %c0_i32_2 = arith.constant 0 : i32
    return %c0_i32, %c0_i32_0, %c0_i32_1 : i32, i32, i32
  }
  func.func @transform_16(%arg0: i32) -> (i32, i32) {
    %c0_i32 = arith.constant 0 : i32
    %c0_i32_0 = arith.constant 0 : i32
    %c0_i32_1 = arith.constant 0 : i32
    return %c0_i32, %c0_i32_0 : i32, i32
  }
  func.func @transform_17(%arg0: i32) -> (i32, i32) {
    %c0_i32 = arith.constant 0 : i32
    %c0_i32_0 = arith.constant 0 : i32
    %c0_i32_1 = arith.constant 0 : i32
    return %c0_i32, %c0_i32_0 : i32, i32
  }
  func.func @transform_18(%arg0: i32) -> (i32, i32, i32) {
    %c0_i32 = arith.constant 0 : i32
    %c0_i32_0 = arith.constant 0 : i32
    %c0_i32_1 = arith.constant 0 : i32
    return %arg0, %c0_i32, %c0_i32_0 : i32, i32, i32
  }
}

</mosaic_0001>

<llo_original>
// kernel: bert_classifier.1
$region0: #{bert_classifier.1}
  #allocation0 [shape = 'u32[]', space=smem, size = 0x4, offset = 0x4, fixed_abs, tag = 'smem constant byte address 0x4 - core index']
  #allocation1 [shape = 'u32[144,128]{1,0:T(1,128)}', space=vmem, size = 0x12000, scoped, tag = 'internal scratch']
  %s0 = inlined_call_operand.vmem [shape: f32[2,8,32], index: 0, kind: input, shape index: {}]
  %s1 = inlined_call_operand.vmem [shape: f32[2,1,8], index: 1, kind: input, shape index: {}]
  %s2 = inlined_call_operand.vmem [shape: f32[1,32], index: 2, kind: input, shape index: {}]
  %s3 = inlined_call_operand.vmem [shape: f32[1,32], index: 3, kind: input, shape index: {}]
  %s4 = inlined_call_operand.vmem [shape: bf16[2,2,32,48], index: 4, kind: input, shape index: {}]
  %s5 = inlined_call_operand.vmem [shape: f32[2,2,1,48], index: 5, kind: input, shape index: {}]
  %s6 = inlined_call_operand.vmem [shape: bf16[2,2,16,32], index: 6, kind: input, shape index: {}]
  %s7 = inlined_call_operand.vmem [shape: f32[2,1,32], index: 7, kind: input, shape index: {}]
  %s8 = inlined_call_operand.vmem [shape: f32[2,1,32], index: 8, kind: input, shape index: {}]
  %s9 = inlined_call_operand.vmem [shape: f32[2,1,32], index: 9, kind: input, shape index: {}]
  %s10 = inlined_call_operand.vmem [shape: bf16[2,32,64], index: 10, kind: input, shape index: {}]
  %s11 = inlined_call_operand.vmem [shape: f32[2,1,64], index: 11, kind: input, shape index: {}]
  %s12 = inlined_call_operand.vmem [shape: bf16[2,64,32], index: 12, kind: input, shape index: {}]
  %s13 = inlined_call_operand.vmem [shape: f32[2,1,32], index: 13, kind: input, shape index: {}]
  %s14 = inlined_call_operand.vmem [shape: f32[2,1,32], index: 14, kind: input, shape index: {}]
  %s15 = inlined_call_operand.vmem [shape: f32[2,1,32], index: 15, kind: input, shape index: {}]
  %s16 = inlined_call_operand.vmem [shape: bf16[32,128], index: 16, kind: input, shape index: {}]
  %s17 = inlined_call_operand.vmem [shape: f32[1,128], index: 17, kind: input, shape index: {}]
  %s18 = inlined_call_operand.vmem [shape: f32[2,8,128], index: 18, kind: output, shape index: {}]
  %s19 = sld [smem:[#allocation0]]
  $region105: #{bert_classifier.1} parent=0
    _
  %s21 = ssub.s32 1, %s19
  %s22 = scalar_select 0, %s21, %s19
  loop: start=0, step=1, limit=4
  $region2: #{bert_classifier.1} parent=0 // loop_pre_header
    _
  $region3: #{bert_classifier.1} parent=0 // loop_header
    %s24 = sphi 0, %s28
    %p25 = scmp.ge.s32.totalorder %s24, 4
    %s34 = sphi 0, %s36
    %s37 = sphi 0, %s34
    %s38 = sphi 0, %s37
    %s54 = sphi 0, %s38
    %s60 = sphi 0, %s62
    %s63 = sphi 0, %s60
    %s64 = sphi 0, %s63
    %s80 = sphi 0, %s64
    %s84 = sphi 0, %s84
    %s86 = sphi 0, %s84
    %s87 = sphi 0, %s86
    %s101 = sphi 0, %s87
    %s105 = sphi 0, %s105
    %s107 = sphi 0, %s105
    %s108 = sphi 0, %s107
    %s122 = sphi 0, %s108
    %s126 = sphi 0, %s126
    %s128 = sphi 0, %s126
    %s129 = sphi 0, %s128
    %s143 = sphi 0, %s129
    %s147 = sphi 0, %s147
    %s149 = sphi 0, %s147
    %s150 = sphi 0, %s149
    %s164 = sphi 0, %s150
    %s168 = sphi 0, %s168
    %s170 = sphi 0, %s168
    %s171 = sphi 0, %s170
    %s185 = sphi 0, %s171
    %s189 = sphi 0, %s189
    %s191 = sphi 0, %s189
    %s192 = sphi 0, %s191
    %s206 = sphi 0, %s192
    %s210 = sphi 0, %s210
    %s212 = sphi 0, %s210
    %s213 = sphi 0, %s212
    %s227 = sphi 0, %s213
    %s231 = sphi 0, %s231
    %s233 = sphi 0, %s231
    %s234 = sphi 0, %s233
    %s248 = sphi 0, %s234
    %s252 = sphi 0, %s252
    %s254 = sphi 0, %s252
    %s255 = sphi 0, %s254
    %s269 = sphi 0, %s255
    %s273 = sphi 0, %s273
    %s275 = sphi 0, %s273
    %s276 = sphi 0, %s275
    %s290 = sphi 0, %s276
    %s294 = sphi 0, %s294
    %s296 = sphi 0, %s294
    %s297 = sphi 0, %s296
    %s311 = sphi 0, %s297
    %s315 = sphi 0, %s315
    %s317 = sphi 0, %s315
    %s318 = sphi 0, %s317
    %s332 = sphi 0, %s318
    %s336 = sphi 0, %s336
    %s338 = sphi 0, %s336
    %s339 = sphi 0, %s338
    %s353 = sphi 0, %s339
    %s357 = sphi 0, %s357
    %s359 = sphi 0, %s357
    %s360 = sphi 0, %s359
    %s374 = sphi 0, %s360
    %s378 = sphi 0, %s378
    %s380 = sphi 0, %s378
    %s381 = sphi 0, %s380
    %s395 = sphi 0, %s381
    %s399 = sphi 0, %s399
    %s401 = sphi 0, %s399
    %s402 = sphi 0, %s401
    %s416 = sphi 0, %s402
    %s422 = sphi 0, %s424
    %s425 = sphi 0, %s422
    %s426 = sphi 0, %s425
    %s442 = sphi 0, %s426
  $region4: #{bert_classifier.1} parent=0 // loop_header_branch
    %27 = sbr.rel (%p25) target = $region8
  $region5: #{bert_classifier.1} parent=0 // loop_body
    %s29 = ssub.s32 %s24, 1
    %s30 = ssub.s32 %s24, 2
    %s31 = sadd.s32 %s24, 1
    %s32 = ssub.s32 %s24, %s31
    %p33 = scmp.eq.s32.totalorder %s32, 0
    %s35 = sadd.s32 %s34, 1
    %s36 = scalar_select %p33, %s34, %s35
    %p39 = pneg %p33
    %p40 = scmp.eq.s32.totalorder %s24, 1
    %p41 = por %p39, %p40
    %p42 = scmp.ne.s32.totalorder %s34, %s37
    %p43 = scmp.eq.s32.totalorder %s24, 0
    %p44 = por %p42, %p43
    %p45 = scmp.ne.s32.totalorder %s34, %s37
    %p46 = scmp.eq.s32.totalorder %s29, 1
    %p47 = por %p45, %p46
    %p48 = scmp.ne.s32.totalorder %s37, %s38
    %p49 = scmp.eq.s32.totalorder %s29, 0
    %p50 = por %p48, %p49
    %p51 = scmp.ne.s32.totalorder %s37, %s38
    %p52 = scmp.eq.s32.totalorder %s30, 1
    %p53 = por %p51, %p52
    %p55 = scmp.ne.s32.totalorder %s38, %s54
    %p56 = scmp.eq.s32.totalorder %s30, 0
    %p57 = por %p55, %p56
    %s58 = ssub.s32 %s24, %s31
    %p59 = scmp.eq.s32.totalorder %s58, 0
    %s61 = sadd.s32 %s60, 1
    %s62 = scalar_select %p59, %s60, %s61
    %p65 = pneg %p59
    %p66 = scmp.eq.s32.totalorder %s24, 1
    %p67 = por %p65, %p66
    %p68 = scmp.ne.s32.totalorder %s60, %s63
    %p69 = scmp.eq.s32.totalorder %s24, 0
    %p70 = por %p68, %p69
    %p71 = scmp.ne.s32.totalorder %s60, %s63
    %p72 = scmp.eq.s32.totalorder %s29, 1
    %p73 = por %p71, %p72
    %p74 = scmp.ne.s32.totalorder %s63, %s64
    %p75 = scmp.eq.s32.totalorder %s29, 0
    %p76 = por %p74, %p75
    %p77 = scmp.ne.s32.totalorder %s63, %s64
    %p78 = scmp.eq.s32.totalorder %s30, 1
    %p79 = por %p77, %p78
    %p81 = scmp.ne.s32.totalorder %s64, %s80
    %p82 = scmp.eq.s32.totalorder %s30, 0
    %p83 = por %p81, %p82
    %s85 = sadd.s32 %s84, 1
    %p88 = scmp.eq.s32.totalorder %s24, 1
    %p89 = scmp.ne.s32.totalorder %s84, %s86
    %p90 = scmp.eq.s32.totalorder %s24, 0
    %p91 = por %p89, %p90
    %p92 = scmp.ne.s32.totalorder %s84, %s86
    %p93 = scmp.eq.s32.totalorder %s29, 1
    %p94 = por %p92, %p93
    %p95 = scmp.ne.s32.totalorder %s86, %s87
    %p96 = scmp.eq.s32.totalorder %s29, 0
    %p97 = por %p95, %p96
    %p98 = scmp.ne.s32.totalorder %s86, %s87
    %p99 = scmp.eq.s32.totalorder %s30, 1
    %p100 = por %p98, %p99
    %p102 = scmp.ne.s32.totalorder %s87, %s101
    %p103 = scmp.eq.s32.totalorder %s30, 0
    %p104 = por %p102, %p103
    %s106 = sadd.s32 %s105, 1
    %p109 = scmp.eq.s32.totalorder %s24, 1
    %p110 = scmp.ne.s32.totalorder %s105, %s107
    %p111 = scmp.eq.s32.totalorder %s24, 0
    %p112 = por %p110, %p111
    %p113 = scmp.ne.s32.totalorder %s105, %s107
    %p114 = scmp.eq.s32.totalorder %s29, 1
    %p115 = por %p113, %p114
    %p116 = scmp.ne.s32.totalorder %s107, %s108
    %p117 = scmp.eq.s32.totalorder %s29, 0
    %p118 = por %p116, %p117
    %p119 = scmp.ne.s32.totalorder %s107, %s108
    %p120 = scmp.eq.s32.totalorder %s30, 1
    %p121 = por %p119, %p120
    %p123 = scmp.ne.s32.totalorder %s108, %s122
    %p124 = scmp.eq.s32.totalorder %s30, 0
    %p125 = por %p123, %p124
    %s127 = sadd.s32 %s126, 1
    %p130 = scmp.eq.s32.totalorder %s24, 1
    %p131 = scmp.ne.s32.totalorder %s126, %s128
    %p132 = scmp.eq.s32.totalorder %s24, 0
    %p133 = por %p131, %p132
    %p134 = scmp.ne.s32.totalorder %s126, %s128
    %p135 = scmp.eq.s32.totalorder %s29, 1
    %p136 = por %p134, %p135
    %p137 = scmp.ne.s32.totalorder %s128, %s129
    %p138 = scmp.eq.s32.totalorder %s29, 0
    %p139 = por %p137, %p138
    %p140 = scmp.ne.s32.totalorder %s128, %s129
    %p141 = scmp.eq.s32.totalorder %s30, 1
    %p142 = por %p140, %p141
    %p144 = scmp.ne.s32.totalorder %s129, %s143
    %p145 = scmp.eq.s32.totalorder %s30, 0
    %p146 = por %p144, %p145
    %s148 = sadd.s32 %s147, 1
    %p151 = scmp.eq.s32.totalorder %s24, 1
    %p152 = scmp.ne.s32.totalorder %s147, %s149
    %p153 = scmp.eq.s32.totalorder %s24, 0
    %p154 = por %p152, %p153
    %p155 = scmp.ne.s32.totalorder %s147, %s149
    %p156 = scmp.eq.s32.totalorder %s29, 1
    %p157 = por %p155, %p156
    %p158 = scmp.ne.s32.totalorder %s149, %s150
    %p159 = scmp.eq.s32.totalorder %s29, 0
    %p160 = por %p158, %p159
    %p161 = scmp.ne.s32.totalorder %s149, %s150
    %p162 = scmp.eq.s32.totalorder %s30, 1
    %p163 = por %p161, %p162
    %p165 = scmp.ne.s32.totalorder %s150, %s164
    %p166 = scmp.eq.s32.totalorder %s30, 0
    %p167 = por %p165, %p166
    %s169 = sadd.s32 %s168, 1
    %p172 = scmp.eq.s32.totalorder %s24, 1
    %p173 = scmp.ne.s32.totalorder %s168, %s170
    %p174 = scmp.eq.s32.totalorder %s24, 0
    %p175 = por %p173, %p174
    %p176 = scmp.ne.s32.totalorder %s168, %s170
    %p177 = scmp.eq.s32.totalorder %s29, 1
    %p178 = por %p176, %p177
    %p179 = scmp.ne.s32.totalorder %s170, %s171
    %p180 = scmp.eq.s32.totalorder %s29, 0
    %p181 = por %p179, %p180
    %p182 = scmp.ne.s32.totalorder %s170, %s171
    %p183 = scmp.eq.s32.totalorder %s30, 1
    %p184 = por %p182, %p183
    %p186 = scmp.ne.s32.totalorder %s171, %s185
    %p187 = scmp.eq.s32.totalorder %s30, 0
    %p188 = por %p186, %p187
    %s190 = sadd.s32 %s189, 1
    %p193 = scmp.eq.s32.totalorder %s24, 1
    %p194 = scmp.ne.s32.totalorder %s189, %s191
    %p195 = scmp.eq.s32.totalorder %s24, 0
    %p196 = por %p194, %p195
    %p197 = scmp.ne.s32.totalorder %s189, %s191
    %p198 = scmp.eq.s32.totalorder %s29, 1
    %p199 = por %p197, %p198
    %p200 = scmp.ne.s32.totalorder %s191, %s192
    %p201 = scmp.eq.s32.totalorder %s29, 0
    %p202 = por %p200, %p201
    %p203 = scmp.ne.s32.totalorder %s191, %s192
    %p204 = scmp.eq.s32.totalorder %s30, 1
    %p205 = por %p203, %p204
    %p207 = scmp.ne.s32.totalorder %s192, %s206
    %p208 = scmp.eq.s32.totalorder %s30, 0
    %p209 = por %p207, %p208
    %s211 = sadd.s32 %s210, 1
    %p214 = scmp.eq.s32.totalorder %s24, 1
    %p215 = scmp.ne.s32.totalorder %s210, %s212
    %p216 = scmp.eq.s32.totalorder %s24, 0
    %p217 = por %p215, %p216
    %p218 = scmp.ne.s32.totalorder %s210, %s212
    %p219 = scmp.eq.s32.totalorder %s29, 1
    %p220 = por %p218, %p219
    %p221 = scmp.ne.s32.totalorder %s212, %s213
    %p222 = scmp.eq.s32.totalorder %s29, 0
    %p223 = por %p221, %p222
    %p224 = scmp.ne.s32.totalorder %s212, %s213
    %p225 = scmp.eq.s32.totalorder %s30, 1
    %p226 = por %p224, %p225
    %p228 = scmp.ne.s32.totalorder %s213, %s227
    %p229 = scmp.eq.s32.totalorder %s30, 0
    %p230 = por %p228, %p229
    %s232 = sadd.s32 %s231, 1
    %p235 = scmp.eq.s32.totalorder %s24, 1
    %p236 = scmp.ne.s32.totalorder %s231, %s233
    %p237 = scmp.eq.s32.totalorder %s24, 0
    %p238 = por %p236, %p237
    %p239 = scmp.ne.s32.totalorder %s231, %s233
    %p240 = scmp.eq.s32.totalorder %s29, 1
    %p241 = por %p239, %p240
    %p242 = scmp.ne.s32.totalorder %s233, %s234
    %p243 = scmp.eq.s32.totalorder %s29, 0
    %p244 = por %p242, %p243
    %p245 = scmp.ne.s32.totalorder %s233, %s234
    %p246 = scmp.eq.s32.totalorder %s30, 1
    %p247 = por %p245, %p246
    %p249 = scmp.ne.s32.totalorder %s234, %s248
    %p250 = scmp.eq.s32.totalorder %s30, 0
    %p251 = por %p249, %p250
    %s253 = sadd.s32 %s252, 1
    %p256 = scmp.eq.s32.totalorder %s24, 1
    %p257 = scmp.ne.s32.totalorder %s252, %s254
    %p258 = scmp.eq.s32.totalorder %s24, 0
    %p259 = por %p257, %p258
    %p260 = scmp.ne.s32.totalorder %s252, %s254
    %p261 = scmp.eq.s32.totalorder %s29, 1
    %p262 = por %p260, %p261
    %p263 = scmp.ne.s32.totalorder %s254, %s255
    %p264 = scmp.eq.s32.totalorder %s29, 0
    %p265 = por %p263, %p264
    %p266 = scmp.ne.s32.totalorder %s254, %s255
    %p267 = scmp.eq.s32.totalorder %s30, 1
    %p268 = por %p266, %p267
    %p270 = scmp.ne.s32.totalorder %s255, %s269
    %p271 = scmp.eq.s32.totalorder %s30, 0
    %p272 = por %p270, %p271
    %s274 = sadd.s32 %s273, 1
    %p277 = scmp.eq.s32.totalorder %s24, 1
    %p278 = scmp.ne.s32.totalorder %s273, %s275
    %p279 = scmp.eq.s32.totalorder %s24, 0
    %p280 = por %p278, %p279
    %p281 = scmp.ne.s32.totalorder %s273, %s275
    %p282 = scmp.eq.s32.totalorder %s29, 1
    %p283 = por %p281, %p282
    %p284 = scmp.ne.s32.totalorder %s275, %s276
    %p285 = scmp.eq.s32.totalorder %s29, 0
    %p286 = por %p284, %p285
    %p287 = scmp.ne.s32.totalorder %s275, %s276
    %p288 = scmp.eq.s32.totalorder %s30, 1
    %p289 = por %p287, %p288
    %p291 = scmp.ne.s32.totalorder %s276, %s290
    %p292 = scmp.eq.s32.totalorder %s30, 0
    %p293 = por %p291, %p292
    %s295 = sadd.s32 %s294, 1
    %p298 = scmp.eq.s32.totalorder %s24, 1
    %p299 = scmp.ne.s32.totalorder %s294, %s296
    %p300 = scmp.eq.s32.totalorder %s24, 0
    %p301 = por %p299, %p300
    %p302 = scmp.ne.s32.totalorder %s294, %s296
    %p303 = scmp.eq.s32.totalorder %s29, 1
    %p304 = por %p302, %p303
    %p305 = scmp.ne.s32.totalorder %s296, %s297
    %p306 = scmp.eq.s32.totalorder %s29, 0
    %p307 = por %p305, %p306
    %p308 = scmp.ne.s32.totalorder %s296, %s297
    %p309 = scmp.eq.s32.totalorder %s30, 1
    %p310 = por %p308, %p309
    %p312 = scmp.ne.s32.totalorder %s297, %s311
    %p313 = scmp.eq.s32.totalorder %s30, 0
    %p314 = por %p312, %p313
    %s316 = sadd.s32 %s315, 1
    %p319 = scmp.eq.s32.totalorder %s24, 1
    %p320 = scmp.ne.s32.totalorder %s315, %s317
    %p321 = scmp.eq.s32.totalorder %s24, 0
    %p322 = por %p320, %p321
    %p323 = scmp.ne.s32.totalorder %s315, %s317
    %p324 = scmp.eq.s32.totalorder %s29, 1
    %p325 = por %p323, %p324
    %p326 = scmp.ne.s32.totalorder %s317, %s318
    %p327 = scmp.eq.s32.totalorder %s29, 0
    %p328 = por %p326, %p327
    %p329 = scmp.ne.s32.totalorder %s317, %s318
    %p330 = scmp.eq.s32.totalorder %s30, 1
    %p331 = por %p329, %p330
    %p333 = scmp.ne.s32.totalorder %s318, %s332
    %p334 = scmp.eq.s32.totalorder %s30, 0
    %p335 = por %p333, %p334
    %s337 = sadd.s32 %s336, 1
    %p340 = scmp.eq.s32.totalorder %s24, 1
    %p341 = scmp.ne.s32.totalorder %s336, %s338
    %p342 = scmp.eq.s32.totalorder %s24, 0
    %p343 = por %p341, %p342
    %p344 = scmp.ne.s32.totalorder %s336, %s338
    %p345 = scmp.eq.s32.totalorder %s29, 1
    %p346 = por %p344, %p345
    %p347 = scmp.ne.s32.totalorder %s338, %s339
    %p348 = scmp.eq.s32.totalorder %s29, 0
    %p349 = por %p347, %p348
    %p350 = scmp.ne.s32.totalorder %s338, %s339
    %p351 = scmp.eq.s32.totalorder %s30, 1
    %p352 = por %p350, %p351
    %p354 = scmp.ne.s32.totalorder %s339, %s353
    %p355 = scmp.eq.s32.totalorder %s30, 0
    %p356 = por %p354, %p355
    %s358 = sadd.s32 %s357, 1
    %p361 = scmp.eq.s32.totalorder %s24, 1
    %p362 = scmp.ne.s32.totalorder %s357, %s359
    %p363 = scmp.eq.s32.totalorder %s24, 0
    %p364 = por %p362, %p363
    %p365 = scmp.ne.s32.totalorder %s357, %s359
    %p366 = scmp.eq.s32.totalorder %s29, 1
    %p367 = por %p365, %p366
    %p368 = scmp.ne.s32.totalorder %s359, %s360
    %p369 = scmp.eq.s32.totalorder %s29, 0
    %p370 = por %p368, %p369
    %p371 = scmp.ne.s32.totalorder %s359, %s360
    %p372 = scmp.eq.s32.totalorder %s30, 1
    %p373 = por %p371, %p372
    %p375 = scmp.ne.s32.totalorder %s360, %s374
    %p376 = scmp.eq.s32.totalorder %s30, 0
    %p377 = por %p375, %p376
    %s379 = sadd.s32 %s378, 1
    %p382 = scmp.eq.s32.totalorder %s24, 1
    %p383 = scmp.ne.s32.totalorder %s378, %s380
    %p384 = scmp.eq.s32.totalorder %s24, 0
    %p385 = por %p383, %p384
    %p386 = scmp.ne.s32.totalorder %s378, %s380
    %p387 = scmp.eq.s32.totalorder %s29, 1
    %p388 = por %p386, %p387
    %p389 = scmp.ne.s32.totalorder %s380, %s381
    %p390 = scmp.eq.s32.totalorder %s29, 0
    %p391 = por %p389, %p390
    %p392 = scmp.ne.s32.totalorder %s380, %s381
    %p393 = scmp.eq.s32.totalorder %s30, 1
    %p394 = por %p392, %p393
    %p396 = scmp.ne.s32.totalorder %s381, %s395
    %p397 = scmp.eq.s32.totalorder %s30, 0
    %p398 = por %p396, %p397
    %s400 = sadd.s32 %s399, 1
    %p403 = scmp.eq.s32.totalorder %s24, 1
    %p404 = scmp.ne.s32.totalorder %s399, %s401
    %p405 = scmp.eq.s32.totalorder %s24, 0
    %p406 = por %p404, %p405
    %p407 = scmp.ne.s32.totalorder %s399, %s401
    %p408 = scmp.eq.s32.totalorder %s29, 1
    %p409 = por %p407, %p408
    %p410 = scmp.ne.s32.totalorder %s401, %s402
    %p411 = scmp.eq.s32.totalorder %s29, 0
    %p412 = por %p410, %p411
    %p413 = scmp.ne.s32.totalorder %s401, %s402
    %p414 = scmp.eq.s32.totalorder %s30, 1
    %p415 = por %p413, %p414
    %p417 = scmp.ne.s32.totalorder %s402, %s416
    %p418 = scmp.eq.s32.totalorder %s30, 0
    %p419 = por %p417, %p418
    %s420 = ssub.s32 %s24, %s31
    %p421 = scmp.eq.s32.totalorder %s420, 0
    %s423 = sadd.s32 %s422, 1
    %s424 = scalar_select %p421, %s422, %s423
    %p427 = pneg %p421
    %p428 = scmp.eq.s32.totalorder %s24, 1
    %p429 = por %p427, %p428
    %p430 = scmp.ne.s32.totalorder %s422, %s425
    %p431 = scmp.eq.s32.totalorder %s24, 0
    %p432 = por %p430, %p431
    %p433 = scmp.ne.s32.totalorder %s422, %s425
    %p434 = scmp.eq.s32.totalorder %s29, 1
    %p435 = por %p433, %p434
    %p436 = scmp.ne.s32.totalorder %s425, %s426
    %p437 = scmp.eq.s32.totalorder %s29, 0
    %p438 = por %p436, %p437
    %p439 = scmp.ne.s32.totalorder %s425, %s426
    %p440 = scmp.eq.s32.totalorder %s30, 1
    %p441 = por %p439, %p440
    %p443 = scmp.ne.s32.totalorder %s426, %s442
    %p444 = scmp.eq.s32.totalorder %s30, 0
    %p445 = por %p443, %p444
    %p446 = scmp.le.s32.totalorder 1, %s24
    %p447 = scmp.lt.s32.totalorder %s24, 3
    %p448 = pnand %p446, %p447
    %p449 = pneg %p448
    // Predicated region
    $region9: #{bert_classifier.1} parent=5 // pred_check
      _
    $region10: #{bert_classifier.1} parent=5 // pred_check_branch
      %451 = sbr.rel (%p448) target = $region12
    $region11: #{bert_classifier.1} parent=5 // pred_region
      %s452 = ssub.s32 %s24, 1
      // Predicated region
      $region13: #{bert_classifier.1} parent=11 // pred_check
        %p453 = pneg %p97
      $region14: #{bert_classifier.1} parent=11 // pred_check_branch
        %455 = sbr.rel (%p453) target = $region16
      $region15: #{bert_classifier.1} parent=11 // pred_region
        _
      $region16: #{bert_classifier.1} parent=11 // pred_fallthru
        _
      // Predicated region
      $region17: #{bert_classifier.1} parent=11 // pred_check
        %p456 = pneg %p118
      $region18: #{bert_classifier.1} parent=11 // pred_check_branch
        %458 = sbr.rel (%p456) target = $region20
      $region19: #{bert_classifier.1} parent=11 // pred_region
        _
      $region20: #{bert_classifier.1} parent=11 // pred_fallthru
        _
      // Predicated region
      $region21: #{bert_classifier.1} parent=11 // pred_check
        %p459 = pneg %p139
      $region22: #{bert_classifier.1} parent=11 // pred_check_branch
        %461 = sbr.rel (%p459) target = $region24
      $region23: #{bert_classifier.1} parent=11 // pred_region
        _
      $region24: #{bert_classifier.1} parent=11 // pred_fallthru
        _
      // Predicated region
      $region25: #{bert_classifier.1} parent=11 // pred_check
        %p462 = pneg %p160
      $region26: #{bert_classifier.1} parent=11 // pred_check_branch
        %464 = sbr.rel (%p462) target = $region28
      $region27: #{bert_classifier.1} parent=11 // pred_region
        _
      $region28: #{bert_classifier.1} parent=11 // pred_fallthru
        _
      // Predicated region
      $region29: #{bert_classifier.1} parent=11 // pred_check
        %p465 = pneg %p181
      $region30: #{bert_classifier.1} parent=11 // pred_check_branch
        %467 = sbr.rel (%p465) target = $region32
      $region31: #{bert_classifier.1} parent=11 // pred_region
        _
      $region32: #{bert_classifier.1} parent=11 // pred_fallthru
        _
      // Predicated region
      $region33: #{bert_classifier.1} parent=11 // pred_check
        %p468 = pneg %p202
      $region34: #{bert_classifier.1} parent=11 // pred_check_branch
        %470 = sbr.rel (%p468) target = $region36
      $region35: #{bert_classifier.1} parent=11 // pred_region
        _
      $region36: #{bert_classifier.1} parent=11 // pred_fallthru
        _
      // Predicated region
      $region37: #{bert_classifier.1} parent=11 // pred_check
        %p471 = pneg %p223
      $region38: #{bert_classifier.1} parent=11 // pred_check_branch
        %473 = sbr.rel (%p471) target = $region40
      $region39: #{bert_classifier.1} parent=11 // pred_region
        _
      $region40: #{bert_classifier.1} parent=11 // pred_fallthru
        _
      // Predicated region
      $region41: #{bert_classifier.1} parent=11 // pred_check
        %p474 = pneg %p244
      $region42: #{bert_classifier.1} parent=11 // pred_check_branch
        %476 = sbr.rel (%p474) target = $region44
      $region43: #{bert_classifier.1} parent=11 // pred_region
        _
      $region44: #{bert_classifier.1} parent=11 // pred_fallthru
        _
      // Predicated region
      $region45: #{bert_classifier.1} parent=11 // pred_check
        %p477 = pneg %p265
      $region46: #{bert_classifier.1} parent=11 // pred_check_branch
        %479 = sbr.rel (%p477) target = $region48
      $region47: #{bert_classifier.1} parent=11 // pred_region
        _
      $region48: #{bert_classifier.1} parent=11 // pred_fallthru
        _
      // Predicated region
      $region49: #{bert_classifier.1} parent=11 // pred_check
        %p480 = pneg %p286
      $region50: #{bert_classifier.1} parent=11 // pred_check_branch
        %482 = sbr.rel (%p480) target = $region52
      $region51: #{bert_classifier.1} parent=11 // pred_region
        _
      $region52: #{bert_classifier.1} parent=11 // pred_fallthru
        _
      // Predicated region
      $region53: #{bert_classifier.1} parent=11 // pred_check
        %p483 = pneg %p307
      $region54: #{bert_classifier.1} parent=11 // pred_check_branch
        %485 = sbr.rel (%p483) target = $region56
      $region55: #{bert_classifier.1} parent=11 // pred_region
        _
      $region56: #{bert_classifier.1} parent=11 // pred_fallthru
        _
      // Predicated region
      $region57: #{bert_classifier.1} parent=11 // pred_check
        %p486 = pneg %p328
      $region58: #{bert_classifier.1} parent=11 // pred_check_branch
        %488 = sbr.rel (%p486) target = $region60
      $region59: #{bert_classifier.1} parent=11 // pred_region
        _
      $region60: #{bert_classifier.1} parent=11 // pred_fallthru
        _
      // Predicated region
      $region61: #{bert_classifier.1} parent=11 // pred_check
        %p489 = pneg %p349
      $region62: #{bert_classifier.1} parent=11 // pred_check_branch
        %491 = sbr.rel (%p489) target = $region64
      $region63: #{bert_classifier.1} parent=11 // pred_region
        _
      $region64: #{bert_classifier.1} parent=11 // pred_fallthru
        _
      // Predicated region
      $region65: #{bert_classifier.1} parent=11 // pred_check
        %p492 = pneg %p370
      $region66: #{bert_classifier.1} parent=11 // pred_check_branch
        %494 = sbr.rel (%p492) target = $region68
      $region67: #{bert_classifier.1} parent=11 // pred_region
        _
      $region68: #{bert_classifier.1} parent=11 // pred_fallthru
        _
      // Predicated region
      $region69: #{bert_classifier.1} parent=11 // pred_check
        %p495 = pneg %p391
      $region70: #{bert_classifier.1} parent=11 // pred_check_branch
        %497 = sbr.rel (%p495) target = $region72
      $region71: #{bert_classifier.1} parent=11 // pred_region
        _
      $region72: #{bert_classifier.1} parent=11 // pred_fallthru
        _
      // Predicated region
      $region73: #{bert_classifier.1} parent=11 // pred_check
        %p498 = pneg %p412
      $region74: #{bert_classifier.1} parent=11 // pred_check_branch
        %500 = sbr.rel (%p498) target = $region76
      $region75: #{bert_classifier.1} parent=11 // pred_region
        _
      $region76: #{bert_classifier.1} parent=11 // pred_fallthru
        _
    $region12: #{bert_classifier.1} parent=5 // pred_fallthru
      _
    %p501 = scmp.lt.s32.totalorder %s24, 2
    // Predicated region
    $region77: #{bert_classifier.1} parent=5 // pred_check
      %p502 = pneg %p501
    $region78: #{bert_classifier.1} parent=5 // pred_check_branch
      %504 = sbr.rel (%p502) target = $region80
    $region79: #{bert_classifier.1} parent=5 // pred_region
      // Predicated region
      $region81: #{bert_classifier.1} parent=79 // pred_check
        %p505 = pneg %p44
      $region82: #{bert_classifier.1} parent=79 // pred_check_branch
        %507 = sbr.rel (%p505) target = $region84
      $region83: #{bert_classifier.1} parent=79 // pred_region
        %p508 = scmp.lt.s32.totalorder %s24, 1
        %s509 = scalar_select %p508, %s24, 1
        %s510 = smul.addr %s509, 8
        %s511 = scalar_lea.vmem %s0, %s510
      $region84: #{bert_classifier.1} parent=79 // pred_fallthru
        _
      // Predicated region
      $region85: #{bert_classifier.1} parent=79 // pred_check
        %p512 = pneg %p70
      $region86: #{bert_classifier.1} parent=79 // pred_check_branch
        %514 = sbr.rel (%p512) target = $region88
      $region87: #{bert_classifier.1} parent=79 // pred_region
        %p515 = scmp.lt.s32.totalorder %s24, 1
        %s516 = scalar_select %p515, %s24, 1
        %s517 = scalar_lea.vmem %s1, %s516
      $region88: #{bert_classifier.1} parent=79 // pred_fallthru
        _
    $region80: #{bert_classifier.1} parent=5 // pred_fallthru
      _
    %p518 = scmp.le.s32.totalorder 1, %s24
    %p519 = scmp.lt.s32.totalorder %s24, 3
    %p520 = pnand %p518, %p519
    %p521 = pneg %p520
    // Predicated region
    $region89: #{bert_classifier.1} parent=5 // pred_check
      _
    $region90: #{bert_classifier.1} parent=5 // pred_check_branch
      %523 = sbr.rel (%p520) target = $region92
    $region91: #{bert_classifier.1} parent=5 // pred_region
      %s524 = ssub.s32 %s24, 1
      %p525 = scmp.lt.s32.totalorder %s29, 1
      %s526 = scalar_select %p525, %s29, 1
      %s527 = smul.addr %s526, 8
      %s528 = scalar_lea.vmem %s0, %s527
      %p529 = pneg %p50
      %p530 = pneg %p47
      %p531 = scmp.lt.s32.totalorder %s29, 1
      %s532 = scalar_select %p531, %s29, 1
      %s533 = scalar_lea.vmem %s1, %s532
      %p534 = pneg %p76
      %p535 = pneg %p73
      %p536 = pneg %p97
      %p537 = pneg %p94
      %p538 = pneg %p118
      %p539 = pneg %p115
      %p540 = pneg %p139
      %p541 = pneg %p136
      %p542 = pneg %p160
      %p543 = pneg %p157
      %p544 = pneg %p181
      %p545 = pneg %p178
      %p546 = pneg %p202
      %p547 = pneg %p199
      %p548 = pneg %p223
      %p549 = pneg %p220
      %p550 = pneg %p244
      %p551 = pneg %p241
      %p552 = pneg %p265
      %p553 = pneg %p262
      %p554 = pneg %p286
      %p555 = pneg %p283
      %p556 = pneg %p307
      %p557 = pneg %p304
      %p558 = pneg %p328
      %p559 = pneg %p325
      %p560 = pneg %p349
      %p561 = pneg %p346
      %p562 = pneg %p370
      %p563 = pneg %p367
      %p564 = pneg %p391
      %p565 = pneg %p388
      %p566 = pneg %p412
      %p567 = pneg %p409
      %p568 = pneg %p438
      %p569 = pneg %p435
      %p570 = scmp.lt.s32.totalorder %s29, 1
      %s571 = scalar_select %p570, %s29, 1
      %s572 = smul.addr %s571, 8
      %s573 = scalar_lea.vmem %s18, %s572
      %p574 = scmp.lt.s32.totalorder %s29, 1
      %s575 = scalar_select %p574, %s29, 1
      %s576 = smul.addr %s575, 8
      %s577 = scalar_lea.vmem %s0, %s576
      %p578 = scmp.lt.s32.totalorder %s29, 1
      %s579 = scalar_select %p578, %s29, 1
      %s580 = scalar_lea.vmem %s1, %s579
      %p581 = scmp.lt.s32.totalorder %s29, 1
      %s582 = scalar_select %p581, %s29, 1
      %s583 = smul.addr %s582, 8
      %s584 = scalar_lea.vmem %s18, %s583
      %v586 = vld [vmem:[%s577] sm:$0xff]
      %v587 = vld [vmem:[%s2] sm:$0x1]
      %v588 = vld [vmem:[%s3] sm:$0x1]
      %vm589 = vcmask 261120
      %v590 = vsel %vm589, %v586, 0.0
      %591 = vadd.xlane.f32.xlu0 %v590
      %v592 = vpop.xlane.xlu0 %591
      %v593 = vrcp.pop 32.0
      %v594 = vmul.f32 %v592, %v593
      %v595 = vsub.f32 %v586, %v594
      %v596 = vmul.f32 %v595, %v595
      %v597 = vsel %vm589, %v596, 0.0
      %598 = vadd.xlane.f32.xlu0 %v597
      %v599 = vpop.xlane.xlu0 %598
      %v600 = vmul.f32 %v599, %v593
      %v601 = vadd.f32 %v600, 1e-12
      %v602 = vrsqrt.pop %v601
      %v603 = vmul.f32 %v595, %v602
      %v605 = vlaneseq
      %v606 = vshrl.u32 %v605, 7
      %v607 = vsub.s32 0, %v606
      %v608 = vrot.slane %v587, %v607
      %v610 = vmul.f32 %v603, %v608
      %v612 = vlaneseq
      %v613 = vshrl.u32 %v612, 7
      %v614 = vsub.s32 0, %v613
      %v615 = vrot.slane %v588, %v614
      %v617 = vadd.f32 %v610, %v615
      %v618 = vld [vmem:[%s580] sm:$0x1]
      %v620 = vlaneseq
      %v621 = vshrl.u32 %v620, 7
      %v622 = vsub.s32 0, %v621
      %v623 = vrot.slane %v618, %v622
      %v625 = vpack.c.bf16 %v617, %v617
      %v626 = vld [vmem:[%s4] sm:$0xf]
      %v627 = vld [vmem:[%s4 + $0x4] sm:$0xf]
      %v628 = vld [vmem:[%s4 + $0x8] sm:$0xf]
      %v629 = vld [vmem:[%s4 + $0xc] sm:$0xf]
      %v630 = vld [vmem:[%s4 + $0x10] sm:$0xf]
      %v631 = vld [vmem:[%s4 + $0x14] sm:$0xf]
      %v632 = vld [vmem:[%s4 + $0x18] sm:$0xf]
      %v633 = vld [vmem:[%s4 + $0x1c] sm:$0xf]
      %v634 = vld [vmem:[%s5] sm:$0x1]
      %v635 = vld [vmem:[%s5 + $0x1] sm:$0x1]
      %v638 = vlaneseq
      %v639 = vshrl.u32 %v638, 7
      %v640 = vsub.s32 0, %v639
      %v641 = vrot.slane %v634, %v640
      %v642 = vlaneseq
      %v643 = vshrl.u32 %v642, 7
      %v644 = vsub.s32 0, %v643
      %v645 = vrot.slane %v635, %v644
      %v652 = vunpack.c.l.b16 %v626
      %v653 = vunpack.c.l.b16 %v627
      %v654 = vunpack.c.l.b16 %v628
      %v655 = vunpack.c.l.b16 %v629
      %v656 = vpack.c.b16 %v653, %v652
      %v657 = vpack.c.b16 %v655, %v654
      %v661 = vsel %vm589, %v625, 0
      %663 = vmatprep.subr.bf16.mxu0 0
      %664 = vmatpush1.bf16.msra.mxu0 0
      %665 = vmatprep.subr.bf16.mxu0 0
      %666 = vmatpush1.bf16.msra.mxu0 0
      %667 = vmatprep.subr.bf16.mxu0 0
      %668 = vmatpush1.bf16.msra.mxu0 0
      %669 = vmatprep.subr.bf16.mxu0 0
      %670 = vmatpush1.bf16.msra.mxu0 0
      %671 = vmatprep.subr.bf16.mxu0 0
      %672 = vmatpush1.bf16.msra.mxu0 0
      %673 = vmatprep.subr.bf16.mxu0 0
      %674 = vmatpush1.bf16.msra.mxu0 0
      %675 = vmatprep.subr.bf16.mxu0 0
      %676 = vmatpush1.bf16.msra.mxu0 %v657
      %677 = vmatprep.subr.bf16.mxu0 0
      %678 = vmatpush1.bf16.msra.mxu0 %v656
      %679 = vmatprep.subr.bf16.mxu0 0
      %680 = vmatpush2.bf16.msra.mxu0 0
      %681 = vmatprep.subr.bf16.mxu0 0
      %682 = vmatpush2.bf16.msra.mxu0 0
      %683 = vmatprep.subr.bf16.mxu0 0
      %684 = vmatpush2.bf16.msra.mxu0 0
      %685 = vmatprep.subr.bf16.mxu0 0
      %686 = vmatpush2.bf16.msra.mxu0 0
      %687 = vmatprep.subr.bf16.mxu0 0
      %688 = vmatpush2.bf16.msra.mxu0 0
      %689 = vmatprep.subr.bf16.mxu0 0
      %690 = vmatpush2.bf16.msra.mxu0 0
      %691 = vmatprep.subr.bf16.mxu0 0
      %692 = vmatpush2.bf16.msra.mxu0 0
      %693 = vmatprep.subr.bf16.mxu0 0
      %694 = vmatpush2.bf16.msra.mxu0 0
      %695 = vmatprep.mubr.bf16.mxu0 0
      %696 = vmatmul.mubr.bf16.gmra.mxu0 %v661
      %v697 = vpop.f32.mrf.mxu0
      %v698 = vadd.f32 %v641, %v697
      %v699 = vpop.f32.mrf.mxu0
      %v700 = vpop.f32.mrf.mxu0
      %v701 = vpop.f32.mrf.mxu0
      %702 = vdwg.mxu0
      %v707 = vunpack.c.l.b16 %v630
      %v708 = vunpack.c.l.b16 %v631
      %v709 = vunpack.c.l.b16 %v632
      %v710 = vunpack.c.l.b16 %v633
      %v711 = vpack.c.b16 %v708, %v707
      %v712 = vpack.c.b16 %v710, %v709
      %715 = vmatprep.subr.bf16.mxu0 0
      %716 = vmatpush1.bf16.msra.mxu0 0
      %717 = vmatprep.subr.bf16.mxu0 0
      %718 = vmatpush1.bf16.msra.mxu0 0
      %719 = vmatprep.subr.bf16.mxu0 0
      %720 = vmatpush1.bf16.msra.mxu0 0
      %721 = vmatprep.subr.bf16.mxu0 0
      %722 = vmatpush1.bf16.msra.mxu0 0
      %723 = vmatprep.subr.bf16.mxu0 0
      %724 = vmatpush1.bf16.msra.mxu0 0
      %725 = vmatprep.subr.bf16.mxu0 0
      %726 = vmatpush1.bf16.msra.mxu0 0
      %727 = vmatprep.subr.bf16.mxu0 0
      %728 = vmatpush1.bf16.msra.mxu0 %v712
      %729 = vmatprep.subr.bf16.mxu0 0
      %730 = vmatpush1.bf16.msra.mxu0 %v711
      %731 = vmatprep.subr.bf16.mxu0 0
      %732 = vmatpush2.bf16.msra.mxu0 0
      %733 = vmatprep.subr.bf16.mxu0 0
      %734 = vmatpush2.bf16.msra.mxu0 0
      %735 = vmatprep.subr.bf16.mxu0 0
      %736 = vmatpush2.bf16.msra.mxu0 0
      %737 = vmatprep.subr.bf16.mxu0 0
      %738 = vmatpush2.bf16.msra.mxu0 0
      %739 = vmatprep.subr.bf16.mxu0 0
      %740 = vmatpush2.bf16.msra.mxu0 0
      %741 = vmatprep.subr.bf16.mxu0 0
      %742 = vmatpush2.bf16.msra.mxu0 0
      %743 = vmatprep.subr.bf16.mxu0 0
      %744 = vmatpush2.bf16.msra.mxu0 0
      %745 = vmatprep.subr.bf16.mxu0 0
      %746 = vmatpush2.bf16.msra.mxu0 0
      %747 = vmatprep.mubr.bf16.mxu0 0
      %748 = vmatmul.mubr.bf16.gmra.mxu0 %v661
      %v749 = vpop.f32.mrf.mxu0
      %v750 = vadd.f32 %v645, %v749
      %v751 = vpop.f32.mrf.mxu0
      %v752 = vpop.f32.mrf.mxu0
      %v753 = vpop.f32.mrf.mxu0
      %754 = vdwg.mxu0
      %v755 = vpack.c.bf16 %v698, %v698
      %v756 = vpack.c.bf16 %v750, %v750
      %758 = vrot.lane.b32.xlu0 %v755, 112
      %v759 = vpop.permute.xlu0 %758
      %vm760 = vcmask 130048
      %v762 = vsel %vm760, %v755, 0
      %v765 = vsel %vm760, %v759, 0
      %767 = vmatprep.subr.bf16.mxu0 0
      %768 = vmatpush1.bf16.xpose.msra.mxu0 0
      %769 = vmatprep.subr.bf16.mxu0 0
      %770 = vmatpush1.bf16.xpose.msra.mxu0 0
      %771 = vmatprep.subr.bf16.mxu0 0
      %772 = vmatpush1.bf16.xpose.msra.mxu0 0
      %773 = vmatprep.subr.bf16.mxu0 0
      %774 = vmatpush1.bf16.xpose.msra.mxu0 0
      %775 = vmatprep.subr.bf16.mxu0 0
      %776 = vmatpush1.bf16.xpose.msra.mxu0 0
      %777 = vmatprep.subr.bf16.mxu0 0
      %778 = vmatpush1.bf16.xpose.msra.mxu0 0
      %779 = vmatprep.subr.bf16.mxu0 0
      %780 = vmatpush1.bf16.xpose.msra.mxu0 0
      %781 = vmatprep.subr.bf16.mxu0 0
      %782 = vmatpush1.bf16.xpose.msra.mxu0 %v765
      %783 = vmatprep.subr.bf16.mxu0 0
      %784 = vmatpush2.bf16.xpose.msra.mxu0 0
      %785 = vmatprep.subr.bf16.mxu0 0
      %786 = vmatpush2.bf16.xpose.msra.mxu0 0
      %787 = vmatprep.subr.bf16.mxu0 0
      %788 = vmatpush2.bf16.xpose.msra.mxu0 0
      %789 = vmatprep.subr.bf16.mxu0 0
      %790 = vmatpush2.bf16.xpose.msra.mxu0 0
      %791 = vmatprep.subr.bf16.mxu0 0
      %792 = vmatpush2.bf16.xpose.msra.mxu0 0
      %793 = vmatprep.subr.bf16.mxu0 0
      %794 = vmatpush2.bf16.xpose.msra.mxu0 0
      %795 = vmatprep.subr.bf16.mxu0 0
      %796 = vmatpush2.bf16.xpose.msra.mxu0 0
      %797 = vmatprep.subr.bf16.mxu0 0
      %798 = vmatpush2.bf16.xpose.msra.mxu0 0
      %799 = vmatprep.mubr.bf16.mxu0 0
      %800 = vmatmul.mubr.bf16.gmra.mxu0 %v762
      %v801 = vpop.f32.mrf.mxu0
      %v802 = vadd.f32 0.0, %v801
      %v803 = vpop.f32.mrf.mxu0
      %v804 = vpop.f32.mrf.mxu0
      %v805 = vpop.f32.mrf.mxu0
      %806 = vdwg.mxu0
      %808 = vrot.lane.b32.xlu0 %v756, 112
      %v809 = vpop.permute.xlu0 %808
      %v811 = vsel %vm760, %v756, 0
      %v814 = vsel %vm760, %v809, 0
      %816 = vmatprep.subr.bf16.mxu0 0
      %817 = vmatpush1.bf16.xpose.msra.mxu0 0
      %818 = vmatprep.subr.bf16.mxu0 0
      %819 = vmatpush1.bf16.xpose.msra.mxu0 0
      %820 = vmatprep.subr.bf16.mxu0 0
      %821 = vmatpush1.bf16.xpose.msra.mxu0 0
      %822 = vmatprep.subr.bf16.mxu0 0
      %823 = vmatpush1.bf16.xpose.msra.mxu0 0
      %824 = vmatprep.subr.bf16.mxu0 0
      %825 = vmatpush1.bf16.xpose.msra.mxu0 0
      %826 = vmatprep.subr.bf16.mxu0 0
      %827 = vmatpush1.bf16.xpose.msra.mxu0 0
      %828 = vmatprep.subr.bf16.mxu0 0
      %829 = vmatpush1.bf16.xpose.msra.mxu0 0
      %830 = vmatprep.subr.bf16.mxu0 0
      %831 = vmatpush1.bf16.xpose.msra.mxu0 %v814
      %832 = vmatprep.subr.bf16.mxu0 0
      %833 = vmatpush2.bf16.xpose.msra.mxu0 0
      %834 = vmatprep.subr.bf16.mxu0 0
      %835 = vmatpush2.bf16.xpose.msra.mxu0 0
      %836 = vmatprep.subr.bf16.mxu0 0
      %837 = vmatpush2.bf16.xpose.msra.mxu0 0
      %838 = vmatprep.subr.bf16.mxu0 0
      %839 = vmatpush2.bf16.xpose.msra.mxu0 0
      %840 = vmatprep.subr.bf16.mxu0 0
      %841 = vmatpush2.bf16.xpose.msra.mxu0 0
      %842 = vmatprep.subr.bf16.mxu0 0
      %843 = vmatpush2.bf16.xpose.msra.mxu0 0
      %844 = vmatprep.subr.bf16.mxu0 0
      %845 = vmatpush2.bf16.xpose.msra.mxu0 0
      %846 = vmatprep.subr.bf16.mxu0 0
      %847 = vmatpush2.bf16.xpose.msra.mxu0 0
      %848 = vmatprep.mubr.bf16.mxu0 0
      %849 = vmatmul.mubr.bf16.gmra.mxu0 %v811
      %v850 = vpop.f32.mrf.mxu0
      %v851 = vadd.f32 0.0, %v850
      %v852 = vpop.f32.mrf.mxu0
      %v853 = vpop.f32.mrf.mxu0
      %v854 = vpop.f32.mrf.mxu0
      %855 = vdwg.mxu0
      %v856 = vmul.f32 %v802, 0.25
      %v857 = vmul.f32 %v851, 0.25
      %v858 = vadd.f32 %v856, %v623
      %v859 = vadd.f32 %v857, %v623
      %v860 = vmul.f32 %v858, 1.442695
      %v861 = vpow.pop %v860
      %v862 = vmul.f32 %v859, 1.442695
      %v863 = vpow.pop %v862
      %vm864 = vcmask 64512
      %v865 = vsel %vm864, %v861, 0.0
      %866 = vadd.xlane.f32.xlu0 %v865
      %v867 = vpop.xlane.xlu0 %866
      %v868 = vsel %vm864, %v863, 0.0
      %869 = vadd.xlane.f32.xlu0 %v868
      %v870 = vpop.xlane.xlu0 %869
      %v871 = vrcp.pop %v867
      %v872 = vrcp.pop %v870
      %v873 = vmul.f32 %v861, %v871
      %v874 = vmul.f32 %v863, %v872
      %v875 = vpack.c.bf16 %v873, %v873
      %v876 = vpack.c.bf16 %v874, %v874
      %877 = vrot.lane.b32.xlu0 %v755, 96
      %v878 = vpop.permute.xlu0 %877
      %v880 = vsel %vm864, %v875, 0
      %vm882 = vcmask 1043456
      %v884 = vsel %vm882, %v878, 0
      %886 = vmatprep.subr.bf16.mxu0 0
      %887 = vmatpush1.bf16.msra.mxu0 0
      %888 = vmatprep.subr.bf16.mxu0 0
      %889 = vmatpush1.bf16.msra.mxu0 0
      %890 = vmatprep.subr.bf16.mxu0 0
      %891 = vmatpush1.bf16.msra.mxu0 0
      %892 = vmatprep.subr.bf16.mxu0 0
      %893 = vmatpush1.bf16.msra.mxu0 0
      %894 = vmatprep.subr.bf16.mxu0 0
      %895 = vmatpush1.bf16.msra.mxu0 0
      %896 = vmatprep.subr.bf16.mxu0 0
      %897 = vmatpush1.bf16.msra.mxu0 0
      %898 = vmatprep.subr.bf16.mxu0 0
      %899 = vmatpush1.bf16.msra.mxu0 0
      %900 = vmatprep.subr.bf16.mxu0 0
      %901 = vmatpush1.bf16.msra.mxu0 %v884
      %902 = vmatprep.subr.bf16.mxu0 0
      %903 = vmatpush2.bf16.msra.mxu0 0
      %904 = vmatprep.subr.bf16.mxu0 0
      %905 = vmatpush2.bf16.msra.mxu0 0
      %906 = vmatprep.subr.bf16.mxu0 0
      %907 = vmatpush2.bf16.msra.mxu0 0
      %908 = vmatprep.subr.bf16.mxu0 0
      %909 = vmatpush2.bf16.msra.mxu0 0
      %910 = vmatprep.subr.bf16.mxu0 0
      %911 = vmatpush2.bf16.msra.mxu0 0
      %912 = vmatprep.subr.bf16.mxu0 0
      %913 = vmatpush2.bf16.msra.mxu0 0
      %914 = vmatprep.subr.bf16.mxu0 0
      %915 = vmatpush2.bf16.msra.mxu0 0
      %916 = vmatprep.subr.bf16.mxu0 0
      %917 = vmatpush2.bf16.msra.mxu0 0
      %918 = vmatprep.mubr.bf16.mxu0 0
      %919 = vmatmul.mubr.bf16.gmra.mxu0 %v880
      %v920 = vpop.f32.mrf.mxu0
      %v921 = vadd.f32 0.0, %v920
      %v922 = vpop.f32.mrf.mxu0
      %v923 = vpop.f32.mrf.mxu0
      %v924 = vpop.f32.mrf.mxu0
      %925 = vdwg.mxu0
      %926 = vrot.lane.b32.xlu0 %v756, 96
      %v927 = vpop.permute.xlu0 %926
      %v929 = vsel %vm864, %v876, 0
      %v932 = vsel %vm882, %v927, 0
      %934 = vmatprep.subr.bf16.mxu0 0
      %935 = vmatpush1.bf16.msra.mxu0 0
      %936 = vmatprep.subr.bf16.mxu0 0
      %937 = vmatpush1.bf16.msra.mxu0 0
      %938 = vmatprep.subr.bf16.mxu0 0
      %939 = vmatpush1.bf16.msra.mxu0 0
      %940 = vmatprep.subr.bf16.mxu0 0
      %941 = vmatpush1.bf16.msra.mxu0 0
      %942 = vmatprep.subr.bf16.mxu0 0
      %943 = vmatpush1.bf16.msra.mxu0 0
      %944 = vmatprep.subr.bf16.mxu0 0
      %945 = vmatpush1.bf16.msra.mxu0 0
      %946 = vmatprep.subr.bf16.mxu0 0
      %947 = vmatpush1.bf16.msra.mxu0 0
      %948 = vmatprep.subr.bf16.mxu0 0
      %949 = vmatpush1.bf16.msra.mxu0 %v932
      %950 = vmatprep.subr.bf16.mxu0 0
      %951 = vmatpush2.bf16.msra.mxu0 0
      %952 = vmatprep.subr.bf16.mxu0 0
      %953 = vmatpush2.bf16.msra.mxu0 0
      %954 = vmatprep.subr.bf16.mxu0 0
      %955 = vmatpush2.bf16.msra.mxu0 0
      %956 = vmatprep.subr.bf16.mxu0 0
      %957 = vmatpush2.bf16.msra.mxu0 0
      %958 = vmatprep.subr.bf16.mxu0 0
      %959 = vmatpush2.bf16.msra.mxu0 0
      %960 = vmatprep.subr.bf16.mxu0 0
      %961 = vmatpush2.bf16.msra.mxu0 0
      %962 = vmatprep.subr.bf16.mxu0 0
      %963 = vmatpush2.bf16.msra.mxu0 0
      %964 = vmatprep.subr.bf16.mxu0 0
      %965 = vmatpush2.bf16.msra.mxu0 0
      %966 = vmatprep.mubr.bf16.mxu0 0
      %967 = vmatmul.mubr.bf16.gmra.mxu0 %v929
      %v968 = vpop.f32.mrf.mxu0
      %v969 = vadd.f32 0.0, %v968
      %v970 = vpop.f32.mrf.mxu0
      %v971 = vpop.f32.mrf.mxu0
      %v972 = vpop.f32.mrf.mxu0
      %973 = vdwg.mxu0
      %v974 = vpack.c.bf16 %v921, %v921
      %v975 = vpack.c.bf16 %v969, %v969
      %v976 = vld [vmem:[%s6] sm:$0xf]
      %v977 = vld [vmem:[%s6 + $0x4] sm:$0xf]
      %v978 = vld [vmem:[%s6 + $0x8] sm:$0xf]
      %v979 = vld [vmem:[%s6 + $0xc] sm:$0xf]
      %v982 = vunpack.c.l.b16 %v976
      %v983 = vunpack.c.l.b16 %v977
      %v984 = vpack.c.b16 %v983, %v982
      %v987 = vsel %vm760, %v974, 0
      %989 = vmatprep.subr.bf16.mxu0 0
      %990 = vmatpush1.bf16.msra.mxu0 0
      %991 = vmatprep.subr.bf16.mxu0 0
      %992 = vmatpush1.bf16.msra.mxu0 0
      %993 = vmatprep.subr.bf16.mxu0 0
      %994 = vmatpush1.bf16.msra.mxu0 0
      %995 = vmatprep.subr.bf16.mxu0 0
      %996 = vmatpush1.bf16.msra.mxu0 0
      %997 = vmatprep.subr.bf16.mxu0 0
      %998 = vmatpush1.bf16.msra.mxu0 0
      %999 = vmatprep.subr.bf16.mxu0 0
      %1000 = vmatpush1.bf16.msra.mxu0 0
      %1001 = vmatprep.subr.bf16.mxu0 0
      %1002 = vmatpush1.bf16.msra.mxu0 0
      %1003 = vmatprep.subr.bf16.mxu0 0
      %1004 = vmatpush1.bf16.msra.mxu0 %v984
      %1005 = vmatprep.subr.bf16.mxu0 0
      %1006 = vmatpush2.bf16.msra.mxu0 0
      %1007 = vmatprep.subr.bf16.mxu0 0
      %1008 = vmatpush2.bf16.msra.mxu0 0
      %1009 = vmatprep.subr.bf16.mxu0 0
      %1010 = vmatpush2.bf16.msra.mxu0 0
      %1011 = vmatprep.subr.bf16.mxu0 0
      %1012 = vmatpush2.bf16.msra.mxu0 0
      %1013 = vmatprep.subr.bf16.mxu0 0
      %1014 = vmatpush2.bf16.msra.mxu0 0
      %1015 = vmatprep.subr.bf16.mxu0 0
      %1016 = vmatpush2.bf16.msra.mxu0 0
      %1017 = vmatprep.subr.bf16.mxu0 0
      %1018 = vmatpush2.bf16.msra.mxu0 0
      %1019 = vmatprep.subr.bf16.mxu0 0
      %1020 = vmatpush2.bf16.msra.mxu0 0
      %1021 = vmatprep.mubr.bf16.mxu0 0
      %1022 = vmatmul.mubr.bf16.gmra.mxu0 %v987
      %v1023 = vpop.f32.mrf.mxu0
      %v1024 = vadd.f32 0.0, %v1023
      %v1025 = vpop.f32.mrf.mxu0
      %v1026 = vpop.f32.mrf.mxu0
      %v1027 = vpop.f32.mrf.mxu0
      %1028 = vdwg.mxu0
      %v1031 = vunpack.c.l.b16 %v978
      %v1032 = vunpack.c.l.b16 %v979
      %v1033 = vpack.c.b16 %v1032, %v1031
      %v1036 = vsel %vm760, %v975, 0
      %1038 = vmatprep.subr.bf16.mxu0 0
      %1039 = vmatpush1.bf16.msra.mxu0 0
      %1040 = vmatprep.subr.bf16.mxu0 0
      %1041 = vmatpush1.bf16.msra.mxu0 0
      %1042 = vmatprep.subr.bf16.mxu0 0
      %1043 = vmatpush1.bf16.msra.mxu0 0
      %1044 = vmatprep.subr.bf16.mxu0 0
      %1045 = vmatpush1.bf16.msra.mxu0 0
      %1046 = vmatprep.subr.bf16.mxu0 0
      %1047 = vmatpush1.bf16.msra.mxu0 0
      %1048 = vmatprep.subr.bf16.mxu0 0
      %1049 = vmatpush1.bf16.msra.mxu0 0
      %1050 = vmatprep.subr.bf16.mxu0 0
      %1051 = vmatpush1.bf16.msra.mxu0 0
      %1052 = vmatprep.subr.bf16.mxu0 0
      %1053 = vmatpush1.bf16.msra.mxu0 %v1033
      %1054 = vmatprep.subr.bf16.mxu0 0
      %1055 = vmatpush2.bf16.msra.mxu0 0
      %1056 = vmatprep.subr.bf16.mxu0 0
      %1057 = vmatpush2.bf16.msra.mxu0 0
      %1058 = vmatprep.subr.bf16.mxu0 0
      %1059 = vmatpush2.bf16.msra.mxu0 0
      %1060 = vmatprep.subr.bf16.mxu0 0
      %1061 = vmatpush2.bf16.msra.mxu0 0
      %1062 = vmatprep.subr.bf16.mxu0 0
      %1063 = vmatpush2.bf16.msra.mxu0 0
      %1064 = vmatprep.subr.bf16.mxu0 0
      %1065 = vmatpush2.bf16.msra.mxu0 0
      %1066 = vmatprep.subr.bf16.mxu0 0
      %1067 = vmatpush2.bf16.msra.mxu0 0
      %1068 = vmatprep.subr.bf16.mxu0 0
      %1069 = vmatpush2.bf16.msra.mxu0 0
      %1070 = vmatprep.mubr.bf16.mxu0 0
      %1071 = vmatmul.mubr.bf16.gmra.mxu0 %v1036
      %v1072 = vpop.f32.mrf.mxu0
      %v1073 = vadd.f32 0.0, %v1072
      %v1074 = vpop.f32.mrf.mxu0
      %v1075 = vpop.f32.mrf.mxu0
      %v1076 = vpop.f32.mrf.mxu0
      %1077 = vdwg.mxu0
      %v1078 = vsel %vm589, %v1024, 0.0
      %v1079 = vsel %vm589, %v1073, 0.0
      %v1080 = vadd.f32 %v1078, %v1079
      %v1081 = vld [vmem:[%s7] sm:$0x1]
      %v1083 = vlaneseq
      %v1084 = vshrl.u32 %v1083, 7
      %v1085 = vsub.s32 0, %v1084
      %v1086 = vrot.slane %v1081, %v1085
      %v1088 = vadd.f32 %v1080, %v1086
      %v1089 = vadd.f32 %v617, %v1088
      %v1090 = vld [vmem:[%s8] sm:$0x1]
      %v1091 = vld [vmem:[%s9] sm:$0x1]
      %v1092 = vsel %vm589, %v1089, 0.0
      %1093 = vadd.xlane.f32.xlu0 %v1092
      %v1094 = vpop.xlane.xlu0 %1093
      %v1095 = vmul.f32 %v1094, %v593
      %v1096 = vsub.f32 %v1089, %v1095
      %v1097 = vmul.f32 %v1096, %v1096
      %v1098 = vsel %vm589, %v1097, 0.0
      %1099 = vadd.xlane.f32.xlu0 %v1098
      %v1100 = vpop.xlane.xlu0 %1099
      %v1101 = vmul.f32 %v1100, %v593
      %v1102 = vadd.f32 %v1101, 1e-12
      %v1103 = vrsqrt.pop %v1102
      %v1104 = vmul.f32 %v1096, %v1103
      %v1106 = vlaneseq
      %v1107 = vshrl.u32 %v1106, 7
      %v1108 = vsub.s32 0, %v1107
      %v1109 = vrot.slane %v1090, %v1108
      %v1111 = vmul.f32 %v1104, %v1109
      %v1113 = vlaneseq
      %v1114 = vshrl.u32 %v1113, 7
      %v1115 = vsub.s32 0, %v1114
      %v1116 = vrot.slane %v1091, %v1115
      %v1118 = vadd.f32 %v1111, %v1116
      %v1119 = vld [vmem:[%s10] sm:$0xf]
      %v1120 = vld [vmem:[%s10 + $0x4] sm:$0xf]
      %v1121 = vld [vmem:[%s10 + $0x8] sm:$0xf]
      %v1122 = vld [vmem:[%s10 + $0xc] sm:$0xf]
      %v1123 = vpack.c.bf16 %v1118, %v1118
      %v1124 = vld [vmem:[%s11] sm:$0x1]
      %v1126 = vlaneseq
      %v1127 = vshrl.u32 %v1126, 7
      %v1128 = vsub.s32 0, %v1127
      %v1129 = vrot.slane %v1124, %v1128
      %v1135 = vunpack.c.l.b16 %v1119
      %v1136 = vunpack.c.l.b16 %v1120
      %v1137 = vunpack.c.l.b16 %v1121
      %v1138 = vunpack.c.l.b16 %v1122
      %v1139 = vpack.c.b16 %v1136, %v1135
      %v1140 = vpack.c.b16 %v1138, %v1137
      %v1144 = vsel %vm589, %v1123, 0
      %1146 = vmatprep.subr.bf16.mxu0 0
      %1147 = vmatpush1.bf16.msra.mxu0 0
      %1148 = vmatprep.subr.bf16.mxu0 0
      %1149 = vmatpush1.bf16.msra.mxu0 0
      %1150 = vmatprep.subr.bf16.mxu0 0
      %1151 = vmatpush1.bf16.msra.mxu0 0
      %1152 = vmatprep.subr.bf16.mxu0 0
      %1153 = vmatpush1.bf16.msra.mxu0 0
      %1154 = vmatprep.subr.bf16.mxu0 0
      %1155 = vmatpush1.bf16.msra.mxu0 0
      %1156 = vmatprep.subr.bf16.mxu0 0
      %1157 = vmatpush1.bf16.msra.mxu0 0
      %1158 = vmatprep.subr.bf16.mxu0 0
      %1159 = vmatpush1.bf16.msra.mxu0 %v1140
      %1160 = vmatprep.subr.bf16.mxu0 0
      %1161 = vmatpush1.bf16.msra.mxu0 %v1139
      %1162 = vmatprep.subr.bf16.mxu0 0
      %1163 = vmatpush2.bf16.msra.mxu0 0
      %1164 = vmatprep.subr.bf16.mxu0 0
      %1165 = vmatpush2.bf16.msra.mxu0 0
      %1166 = vmatprep.subr.bf16.mxu0 0
      %1167 = vmatpush2.bf16.msra.mxu0 0
      %1168 = vmatprep.subr.bf16.mxu0 0
      %1169 = vmatpush2.bf16.msra.mxu0 0
      %1170 = vmatprep.subr.bf16.mxu0 0
      %1171 = vmatpush2.bf16.msra.mxu0 0
      %1172 = vmatprep.subr.bf16.mxu0 0
      %1173 = vmatpush2.bf16.msra.mxu0 0
      %1174 = vmatprep.subr.bf16.mxu0 0
      %1175 = vmatpush2.bf16.msra.mxu0 0
      %1176 = vmatprep.subr.bf16.mxu0 0
      %1177 = vmatpush2.bf16.msra.mxu0 0
      %1178 = vmatprep.mubr.bf16.mxu0 0
      %1179 = vmatmul.mubr.bf16.gmra.mxu0 %v1144
      %v1180 = vpop.f32.mrf.mxu0
      %v1181 = vadd.f32 %v1129, %v1180
      %v1182 = vpop.f32.mrf.mxu0
      %v1183 = vpop.f32.mrf.mxu0
      %v1184 = vpop.f32.mrf.mxu0
      %1185 = vdwg.mxu0
      %v1186 = vmul.f32 %v1181, %v1181
      %v1187 = vmul.f32 %v1181, %v1186
      %v1188 = vmul.f32 %v1187, 0.044715
      %v1189 = vadd.f32 %v1181, %v1188
      %v1190 = vmul.f32 %v1189, 0.7978846
      %v1191 = vtanh.pop %v1190
      %v1192 = vadd.f32 %v1191, 1.0
      %v1193 = vmul.f32 %v1192, 0.5
      %v1194 = vmul.f32 %v1181, %v1193
      %v1195 = vld [vmem:[%s12] sm:$0xf]
      %v1196 = vld [vmem:[%s12 + $0x4] sm:$0xf]
      %v1197 = vld [vmem:[%s12 + $0x8] sm:$0xf]
      %v1198 = vld [vmem:[%s12 + $0xc] sm:$0xf]
      %v1199 = vld [vmem:[%s12 + $0x10] sm:$0xf]
      %v1200 = vld [vmem:[%s12 + $0x14] sm:$0xf]
      %v1201 = vld [vmem:[%s12 + $0x18] sm:$0xf]
      %v1202 = vld [vmem:[%s12 + $0x1c] sm:$0xf]
      %v1203 = vpack.c.bf16 %v1194, %v1194
      %v1204 = vld [vmem:[%s13] sm:$0x1]
      %v1206 = vlaneseq
      %v1207 = vshrl.u32 %v1206, 7
      %v1208 = vsub.s32 0, %v1207
      %v1209 = vrot.slane %v1204, %v1208
      %v1219 = vunpack.c.l.b16 %v1195
      %v1220 = vunpack.c.l.b16 %v1196
      %v1221 = vunpack.c.l.b16 %v1197
      %v1222 = vunpack.c.l.b16 %v1198
      %v1223 = vunpack.c.l.b16 %v1199
      %v1224 = vunpack.c.l.b16 %v1200
      %v1225 = vunpack.c.l.b16 %v1201
      %v1226 = vunpack.c.l.b16 %v1202
      %v1227 = vpack.c.b16 %v1220, %v1219
      %v1228 = vpack.c.b16 %v1222, %v1221
      %v1229 = vpack.c.b16 %v1224, %v1223
      %v1230 = vpack.c.b16 %v1226, %v1225
      %vm1235 = vcmask 523264
      %v1237 = vsel %vm1235, %v1203, 0
      %1239 = vmatprep.subr.bf16.mxu0 0
      %1240 = vmatpush1.bf16.msra.mxu0 0
      %1241 = vmatprep.subr.bf16.mxu0 0
      %1242 = vmatpush1.bf16.msra.mxu0 0
      %1243 = vmatprep.subr.bf16.mxu0 0
      %1244 = vmatpush1.bf16.msra.mxu0 0
      %1245 = vmatprep.subr.bf16.mxu0 0
      %1246 = vmatpush1.bf16.msra.mxu0 0
      %1247 = vmatprep.subr.bf16.mxu0 0
      %1248 = vmatpush1.bf16.msra.mxu0 %v1230
      %1249 = vmatprep.subr.bf16.mxu0 0
      %1250 = vmatpush1.bf16.msra.mxu0 %v1229
      %1251 = vmatprep.subr.bf16.mxu0 0
      %1252 = vmatpush1.bf16.msra.mxu0 %v1228
      %1253 = vmatprep.subr.bf16.mxu0 0
      %1254 = vmatpush1.bf16.msra.mxu0 %v1227
      %1255 = vmatprep.subr.bf16.mxu0 0
      %1256 = vmatpush2.bf16.msra.mxu0 0
      %1257 = vmatprep.subr.bf16.mxu0 0
      %1258 = vmatpush2.bf16.msra.mxu0 0
      %1259 = vmatprep.subr.bf16.mxu0 0
      %1260 = vmatpush2.bf16.msra.mxu0 0
      %1261 = vmatprep.subr.bf16.mxu0 0
      %1262 = vmatpush2.bf16.msra.mxu0 0
      %1263 = vmatprep.subr.bf16.mxu0 0
      %1264 = vmatpush2.bf16.msra.mxu0 0
      %1265 = vmatprep.subr.bf16.mxu0 0
      %1266 = vmatpush2.bf16.msra.mxu0 0
      %1267 = vmatprep.subr.bf16.mxu0 0
      %1268 = vmatpush2.bf16.msra.mxu0 0
      %1269 = vmatprep.subr.bf16.mxu0 0
      %1270 = vmatpush2.bf16.msra.mxu0 0
      %1271 = vmatprep.mubr.bf16.mxu0 0
      %1272 = vmatmul.mubr.bf16.gmra.mxu0 %v1237
      %v1273 = vpop.f32.mrf.mxu0
      %v1274 = vadd.f32 %v1209, %v1273
      %v1275 = vpop.f32.mrf.mxu0
      %v1276 = vpop.f32.mrf.mxu0
      %v1277 = vpop.f32.mrf.mxu0
      %1278 = vdwg.mxu0
      %v1279 = vadd.f32 %v1118, %v1274
      %v1280 = vld [vmem:[%s14] sm:$0x1]
      %v1281 = vld [vmem:[%s15] sm:$0x1]
      %v1282 = vsel %vm589, %v1279, 0.0
      %1283 = vadd.xlane.f32.xlu0 %v1282
      %v1284 = vpop.xlane.xlu0 %1283
      %v1285 = vmul.f32 %v1284, %v593
      %v1286 = vsub.f32 %v1279, %v1285
      %v1287 = vmul.f32 %v1286, %v1286
      %v1288 = vsel %vm589, %v1287, 0.0
      %1289 = vadd.xlane.f32.xlu0 %v1288
      %v1290 = vpop.xlane.xlu0 %1289
      %v1291 = vmul.f32 %v1290, %v593
      %v1292 = vadd.f32 %v1291, 1e-12
      %v1293 = vrsqrt.pop %v1292
      %v1294 = vmul.f32 %v1286, %v1293
      %v1296 = vlaneseq
      %v1297 = vshrl.u32 %v1296, 7
      %v1298 = vsub.s32 0, %v1297
      %v1299 = vrot.slane %v1280, %v1298
      %v1301 = vmul.f32 %v1294, %v1299
      %v1303 = vlaneseq
      %v1304 = vshrl.u32 %v1303, 7
      %v1305 = vsub.s32 0, %v1304
      %v1306 = vrot.slane %v1281, %v1305
      %v1308 = vadd.f32 %v1301, %v1306
      %v1309 = vpack.c.bf16 %v1308, %v1308
      %s1310 = scalar_lea.vmem %s4, 32
      %v1311 = vld [vmem:[%s1310] sm:$0xf]
      %v1312 = vld [vmem:[%s1310 + $0x4] sm:$0xf]
      %v1313 = vld [vmem:[%s1310 + $0x8] sm:$0xf]
      %v1314 = vld [vmem:[%s1310 + $0xc] sm:$0xf]
      %v1315 = vld [vmem:[%s1310 + $0x10] sm:$0xf]
      %v1316 = vld [vmem:[%s1310 + $0x14] sm:$0xf]
      %v1317 = vld [vmem:[%s1310 + $0x18] sm:$0xf]
      %v1318 = vld [vmem:[%s1310 + $0x1c] sm:$0xf]
      %s1319 = scalar_lea.vmem %s5, 2
      %v1320 = vld [vmem:[%s1319] sm:$0x1]
      %v1321 = vld [vmem:[%s1319 + $0x1] sm:$0x1]
      %v1324 = vlaneseq
      %v1325 = vshrl.u32 %v1324, 7
      %v1326 = vsub.s32 0, %v1325
      %v1327 = vrot.slane %v1320, %v1326
      %v1328 = vlaneseq
      %v1329 = vshrl.u32 %v1328, 7
      %v1330 = vsub.s32 0, %v1329
      %v1331 = vrot.slane %v1321, %v1330
      %v1338 = vunpack.c.l.b16 %v1311
      %v1339 = vunpack.c.l.b16 %v1312
      %v1340 = vunpack.c.l.b16 %v1313
      %v1341 = vunpack.c.l.b16 %v1314
      %v1342 = vpack.c.b16 %v1339, %v1338
      %v1343 = vpack.c.b16 %v1341, %v1340
      %v1347 = vsel %vm589, %v1309, 0
      %1349 = vmatprep.subr.bf16.mxu0 0
      %1350 = vmatpush1.bf16.msra.mxu0 0
      %1351 = vmatprep.subr.bf16.mxu0 0
      %1352 = vmatpush1.bf16.msra.mxu0 0
      %1353 = vmatprep.subr.bf16.mxu0 0
      %1354 = vmatpush1.bf16.msra.mxu0 0
      %1355 = vmatprep.subr.bf16.mxu0 0
      %1356 = vmatpush1.bf16.msra.mxu0 0
      %1357 = vmatprep.subr.bf16.mxu0 0
      %1358 = vmatpush1.bf16.msra.mxu0 0
      %1359 = vmatprep.subr.bf16.mxu0 0
      %1360 = vmatpush1.bf16.msra.mxu0 0
      %1361 = vmatprep.subr.bf16.mxu0 0
      %1362 = vmatpush1.bf16.msra.mxu0 %v1343
      %1363 = vmatprep.subr.bf16.mxu0 0
      %1364 = vmatpush1.bf16.msra.mxu0 %v1342
      %1365 = vmatprep.subr.bf16.mxu0 0
      %1366 = vmatpush2.bf16.msra.mxu0 0
      %1367 = vmatprep.subr.bf16.mxu0 0
      %1368 = vmatpush2.bf16.msra.mxu0 0
      %1369 = vmatprep.subr.bf16.mxu0 0
      %1370 = vmatpush2.bf16.msra.mxu0 0
      %1371 = vmatprep.subr.bf16.mxu0 0
      %1372 = vmatpush2.bf16.msra.mxu0 0
      %1373 = vmatprep.subr.bf16.mxu0 0
      %1374 = vmatpush2.bf16.msra.mxu0 0
      %1375 = vmatprep.subr.bf16.mxu0 0
      %1376 = vmatpush2.bf16.msra.mxu0 0
      %1377 = vmatprep.subr.bf16.mxu0 0
      %1378 = vmatpush2.bf16.msra.mxu0 0
      %1379 = vmatprep.subr.bf16.mxu0 0
      %1380 = vmatpush2.bf16.msra.mxu0 0
      %1381 = vmatprep.mubr.bf16.mxu0 0
      %1382 = vmatmul.mubr.bf16.gmra.mxu0 %v1347
      %v1383 = vpop.f32.mrf.mxu0
      %v1384 = vadd.f32 %v1327, %v1383
      %v1385 = vpop.f32.mrf.mxu0
      %v1386 = vpop.f32.mrf.mxu0
      %v1387 = vpop.f32.mrf.mxu0
      %1388 = vdwg.mxu0
      %v1393 = vunpack.c.l.b16 %v1315
      %v1394 = vunpack.c.l.b16 %v1316
      %v1395 = vunpack.c.l.b16 %v1317
      %v1396 = vunpack.c.l.b16 %v1318
      %v1397 = vpack.c.b16 %v1394, %v1393
      %v1398 = vpack.c.b16 %v1396, %v1395
      %1401 = vmatprep.subr.bf16.mxu0 0
      %1402 = vmatpush1.bf16.msra.mxu0 0
      %1403 = vmatprep.subr.bf16.mxu0 0
      %1404 = vmatpush1.bf16.msra.mxu0 0
      %1405 = vmatprep.subr.bf16.mxu0 0
      %1406 = vmatpush1.bf16.msra.mxu0 0
      %1407 = vmatprep.subr.bf16.mxu0 0
      %1408 = vmatpush1.bf16.msra.mxu0 0
      %1409 = vmatprep.subr.bf16.mxu0 0
      %1410 = vmatpush1.bf16.msra.mxu0 0
      %1411 = vmatprep.subr.bf16.mxu0 0
      %1412 = vmatpush1.bf16.msra.mxu0 0
      %1413 = vmatprep.subr.bf16.mxu0 0
      %1414 = vmatpush1.bf16.msra.mxu0 %v1398
      %1415 = vmatprep.subr.bf16.mxu0 0
      %1416 = vmatpush1.bf16.msra.mxu0 %v1397
      %1417 = vmatprep.subr.bf16.mxu0 0
      %1418 = vmatpush2.bf16.msra.mxu0 0
      %1419 = vmatprep.subr.bf16.mxu0 0
      %1420 = vmatpush2.bf16.msra.mxu0 0
      %1421 = vmatprep.subr.bf16.mxu0 0
      %1422 = vmatpush2.bf16.msra.mxu0 0
      %1423 = vmatprep.subr.bf16.mxu0 0
      %1424 = vmatpush2.bf16.msra.mxu0 0
      %1425 = vmatprep.subr.bf16.mxu0 0
      %1426 = vmatpush2.bf16.msra.mxu0 0
      %1427 = vmatprep.subr.bf16.mxu0 0
      %1428 = vmatpush2.bf16.msra.mxu0 0
      %1429 = vmatprep.subr.bf16.mxu0 0
      %1430 = vmatpush2.bf16.msra.mxu0 0
      %1431 = vmatprep.subr.bf16.mxu0 0
      %1432 = vmatpush2.bf16.msra.mxu0 0
      %1433 = vmatprep.mubr.bf16.mxu0 0
      %1434 = vmatmul.mubr.bf16.gmra.mxu0 %v1347
      %v1435 = vpop.f32.mrf.mxu0
      %v1436 = vadd.f32 %v1331, %v1435
      %v1437 = vpop.f32.mrf.mxu0
      %v1438 = vpop.f32.mrf.mxu0
      %v1439 = vpop.f32.mrf.mxu0
      %1440 = vdwg.mxu0
      %v1441 = vpack.c.bf16 %v1384, %v1384
      %v1442 = vpack.c.bf16 %v1436, %v1436
      %1444 = vrot.lane.b32.xlu0 %v1441, 112
      %v1445 = vpop.permute.xlu0 %1444
      %v1447 = vsel %vm760, %v1441, 0
      %v1450 = vsel %vm760, %v1445, 0
      %1452 = vmatprep.subr.bf16.mxu0 0
      %1453 = vmatpush1.bf16.xpose.msra.mxu0 0
      %1454 = vmatprep.subr.bf16.mxu0 0
      %1455 = vmatpush1.bf16.xpose.msra.mxu0 0
      %1456 = vmatprep.subr.bf16.mxu0 0
      %1457 = vmatpush1.bf16.xpose.msra.mxu0 0
      %1458 = vmatprep.subr.bf16.mxu0 0
      %1459 = vmatpush1.bf16.xpose.msra.mxu0 0
      %1460 = vmatprep.subr.bf16.mxu0 0
      %1461 = vmatpush1.bf16.xpose.msra.mxu0 0
      %1462 = vmatprep.subr.bf16.mxu0 0
      %1463 = vmatpush1.bf16.xpose.msra.mxu0 0
      %1464 = vmatprep.subr.bf16.mxu0 0
      %1465 = vmatpush1.bf16.xpose.msra.mxu0 0
      %1466 = vmatprep.subr.bf16.mxu0 0
      %1467 = vmatpush1.bf16.xpose.msra.mxu0 %v1450
      %1468 = vmatprep.subr.bf16.mxu0 0
      %1469 = vmatpush2.bf16.xpose.msra.mxu0 0
      %1470 = vmatprep.subr.bf16.mxu0 0
      %1471 = vmatpush2.bf16.xpose.msra.mxu0 0
      %1472 = vmatprep.subr.bf16.mxu0 0
      %1473 = vmatpush2.bf16.xpose.msra.mxu0 0
      %1474 = vmatprep.subr.bf16.mxu0 0
      %1475 = vmatpush2.bf16.xpose.msra.mxu0 0
      %1476 = vmatprep.subr.bf16.mxu0 0
      %1477 = vmatpush2.bf16.xpose.msra.mxu0 0
      %1478 = vmatprep.subr.bf16.mxu0 0
      %1479 = vmatpush2.bf16.xpose.msra.mxu0 0
      %1480 = vmatprep.subr.bf16.mxu0 0
      %1481 = vmatpush2.bf16.xpose.msra.mxu0 0
      %1482 = vmatprep.subr.bf16.mxu0 0
      %1483 = vmatpush2.bf16.xpose.msra.mxu0 0
      %1484 = vmatprep.mubr.bf16.mxu0 0
      %1485 = vmatmul.mubr.bf16.gmra.mxu0 %v1447
      %v1486 = vpop.f32.mrf.mxu0
      %v1487 = vadd.f32 0.0, %v1486
      %v1488 = vpop.f32.mrf.mxu0
      %v1489 = vpop.f32.mrf.mxu0
      %v1490 = vpop.f32.mrf.mxu0
      %1491 = vdwg.mxu0
      %1493 = vrot.lane.b32.xlu0 %v1442, 112
      %v1494 = vpop.permute.xlu0 %1493
      %v1496 = vsel %vm760, %v1442, 0
      %v1499 = vsel %vm760, %v1494, 0
      %1501 = vmatprep.subr.bf16.mxu0 0
      %1502 = vmatpush1.bf16.xpose.msra.mxu0 0
      %1503 = vmatprep.subr.bf16.mxu0 0
      %1504 = vmatpush1.bf16.xpose.msra.mxu0 0
      %1505 = vmatprep.subr.bf16.mxu0 0
      %1506 = vmatpush1.bf16.xpose.msra.mxu0 0
      %1507 = vmatprep.subr.bf16.mxu0 0
      %1508 = vmatpush1.bf16.xpose.msra.mxu0 0
      %1509 = vmatprep.subr.bf16.mxu0 0
      %1510 = vmatpush1.bf16.xpose.msra.mxu0 0
      %1511 = vmatprep.subr.bf16.mxu0 0
      %1512 = vmatpush1.bf16.xpose.msra.mxu0 0
      %1513 = vmatprep.subr.bf16.mxu0 0
      %1514 = vmatpush1.bf16.xpose.msra.mxu0 0
      %1515 = vmatprep.subr.bf16.mxu0 0
      %1516 = vmatpush1.bf16.xpose.msra.mxu0 %v1499
      %1517 = vmatprep.subr.bf16.mxu0 0
      %1518 = vmatpush2.bf16.xpose.msra.mxu0 0
      %1519 = vmatprep.subr.bf16.mxu0 0
      %1520 = vmatpush2.bf16.xpose.msra.mxu0 0
      %1521 = vmatprep.subr.bf16.mxu0 0
      %1522 = vmatpush2.bf16.xpose.msra.mxu0 0
      %1523 = vmatprep.subr.bf16.mxu0 0
      %1524 = vmatpush2.bf16.xpose.msra.mxu0 0
      %1525 = vmatprep.subr.bf16.mxu0 0
      %1526 = vmatpush2.bf16.xpose.msra.mxu0 0
      %1527 = vmatprep.subr.bf16.mxu0 0
      %1528 = vmatpush2.bf16.xpose.msra.mxu0 0
      %1529 = vmatprep.subr.bf16.mxu0 0
      %1530 = vmatpush2.bf16.xpose.msra.mxu0 0
      %1531 = vmatprep.subr.bf16.mxu0 0
      %1532 = vmatpush2.bf16.xpose.msra.mxu0 0
      %1533 = vmatprep.mubr.bf16.mxu0 0
      %1534 = vmatmul.mubr.bf16.gmra.mxu0 %v1496
      %v1535 = vpop.f32.mrf.mxu0
      %v1536 = vadd.f32 0.0, %v1535
      %v1537 = vpop.f32.mrf.mxu0
      %v1538 = vpop.f32.mrf.mxu0
      %v1539 = vpop.f32.mrf.mxu0
      %1540 = vdwg.mxu0
      %v1541 = vmul.f32 %v1487, 0.25
      %v1542 = vmul.f32 %v1536, 0.25
      %v1543 = vadd.f32 %v1541, %v623
      %v1544 = vadd.f32 %v1542, %v623
      %v1545 = vmul.f32 %v1543, 1.442695
      %v1546 = vpow.pop %v1545
      %v1547 = vmul.f32 %v1544, 1.442695
      %v1548 = vpow.pop %v1547
      %v1549 = vsel %vm864, %v1546, 0.0
      %1550 = vadd.xlane.f32.xlu0 %v1549
      %v1551 = vpop.xlane.xlu0 %1550
      %v1552 = vsel %vm864, %v1548, 0.0
      %1553 = vadd.xlane.f32.xlu0 %v1552
      %v1554 = vpop.xlane.xlu0 %1553
      %v1555 = vrcp.pop %v1551
      %v1556 = vrcp.pop %v1554
      %v1557 = vmul.f32 %v1546, %v1555
      %v1558 = vmul.f32 %v1548, %v1556
      %v1559 = vpack.c.bf16 %v1557, %v1557
      %v1560 = vpack.c.bf16 %v1558, %v1558
      %1561 = vrot.lane.b32.xlu0 %v1441, 96
      %v1562 = vpop.permute.xlu0 %1561
      %v1564 = vsel %vm864, %v1559, 0
      %v1567 = vsel %vm882, %v1562, 0
      %1569 = vmatprep.subr.bf16.mxu0 0
      %1570 = vmatpush1.bf16.msra.mxu0 0
      %1571 = vmatprep.subr.bf16.mxu0 0
      %1572 = vmatpush1.bf16.msra.mxu0 0
      %1573 = vmatprep.subr.bf16.mxu0 0
      %1574 = vmatpush1.bf16.msra.mxu0 0
      %1575 = vmatprep.subr.bf16.mxu0 0
      %1576 = vmatpush1.bf16.msra.mxu0 0
      %1577 = vmatprep.subr.bf16.mxu0 0
      %1578 = vmatpush1.bf16.msra.mxu0 0
      %1579 = vmatprep.subr.bf16.mxu0 0
      %1580 = vmatpush1.bf16.msra.mxu0 0
      %1581 = vmatprep.subr.bf16.mxu0 0
      %1582 = vmatpush1.bf16.msra.mxu0 0
      %1583 = vmatprep.subr.bf16.mxu0 0
      %1584 = vmatpush1.bf16.msra.mxu0 %v1567
      %1585 = vmatprep.subr.bf16.mxu0 0
      %1586 = vmatpush2.bf16.msra.mxu0 0
      %1587 = vmatprep.subr.bf16.mxu0 0
      %1588 = vmatpush2.bf16.msra.mxu0 0
      %1589 = vmatprep.subr.bf16.mxu0 0
      %1590 = vmatpush2.bf16.msra.mxu0 0
      %1591 = vmatprep.subr.bf16.mxu0 0
      %1592 = vmatpush2.bf16.msra.mxu0 0
      %1593 = vmatprep.subr.bf16.mxu0 0
      %1594 = vmatpush2.bf16.msra.mxu0 0
      %1595 = vmatprep.subr.bf16.mxu0 0
      %1596 = vmatpush2.bf16.msra.mxu0 0
      %1597 = vmatprep.subr.bf16.mxu0 0
      %1598 = vmatpush2.bf16.msra.mxu0 0
      %1599 = vmatprep.subr.bf16.mxu0 0
      %1600 = vmatpush2.bf16.msra.mxu0 0
      %1601 = vmatprep.mubr.bf16.mxu0 0
      %1602 = vmatmul.mubr.bf16.gmra.mxu0 %v1564
      %v1603 = vpop.f32.mrf.mxu0
      %v1604 = vadd.f32 0.0, %v1603
      %v1605 = vpop.f32.mrf.mxu0
      %v1606 = vpop.f32.mrf.mxu0
      %v1607 = vpop.f32.mrf.mxu0
      %1608 = vdwg.mxu0
      %1609 = vrot.lane.b32.xlu0 %v1442, 96
      %v1610 = vpop.permute.xlu0 %1609
      %v1612 = vsel %vm864, %v1560, 0
      %v1615 = vsel %vm882, %v1610, 0
      %1617 = vmatprep.subr.bf16.mxu0 0
      %1618 = vmatpush1.bf16.msra.mxu0 0
      %1619 = vmatprep.subr.bf16.mxu0 0
      %1620 = vmatpush1.bf16.msra.mxu0 0
      %1621 = vmatprep.subr.bf16.mxu0 0
      %1622 = vmatpush1.bf16.msra.mxu0 0
      %1623 = vmatprep.subr.bf16.mxu0 0
      %1624 = vmatpush1.bf16.msra.mxu0 0
      %1625 = vmatprep.subr.bf16.mxu0 0
      %1626 = vmatpush1.bf16.msra.mxu0 0
      %1627 = vmatprep.subr.bf16.mxu0 0
      %1628 = vmatpush1.bf16.msra.mxu0 0
      %1629 = vmatprep.subr.bf16.mxu0 0
      %1630 = vmatpush1.bf16.msra.mxu0 0
      %1631 = vmatprep.subr.bf16.mxu0 0
      %1632 = vmatpush1.bf16.msra.mxu0 %v1615
      %1633 = vmatprep.subr.bf16.mxu0 0
      %1634 = vmatpush2.bf16.msra.mxu0 0
      %1635 = vmatprep.subr.bf16.mxu0 0
      %1636 = vmatpush2.bf16.msra.mxu0 0
      %1637 = vmatprep.subr.bf16.mxu0 0
      %1638 = vmatpush2.bf16.msra.mxu0 0
      %1639 = vmatprep.subr.bf16.mxu0 0
      %1640 = vmatpush2.bf16.msra.mxu0 0
      %1641 = vmatprep.subr.bf16.mxu0 0
      %1642 = vmatpush2.bf16.msra.mxu0 0
      %1643 = vmatprep.subr.bf16.mxu0 0
      %1644 = vmatpush2.bf16.msra.mxu0 0
      %1645 = vmatprep.subr.bf16.mxu0 0
      %1646 = vmatpush2.bf16.msra.mxu0 0
      %1647 = vmatprep.subr.bf16.mxu0 0
      %1648 = vmatpush2.bf16.msra.mxu0 0
      %1649 = vmatprep.mubr.bf16.mxu0 0
      %1650 = vmatmul.mubr.bf16.gmra.mxu0 %v1612
      %v1651 = vpop.f32.mrf.mxu0
      %v1652 = vadd.f32 0.0, %v1651
      %v1653 = vpop.f32.mrf.mxu0
      %v1654 = vpop.f32.mrf.mxu0
      %v1655 = vpop.f32.mrf.mxu0
      %1656 = vdwg.mxu0
      %v1657 = vpack.c.bf16 %v1604, %v1604
      %v1658 = vpack.c.bf16 %v1652, %v1652
      %s1659 = scalar_lea.vmem %s6, 16
      %v1660 = vld [vmem:[%s1659] sm:$0xf]
      %v1661 = vld [vmem:[%s1659 + $0x4] sm:$0xf]
      %v1662 = vld [vmem:[%s1659 + $0x8] sm:$0xf]
      %v1663 = vld [vmem:[%s1659 + $0xc] sm:$0xf]
      %v1666 = vunpack.c.l.b16 %v1660
      %v1667 = vunpack.c.l.b16 %v1661
      %v1668 = vpack.c.b16 %v1667, %v1666
      %v1671 = vsel %vm760, %v1657, 0
      %1673 = vmatprep.subr.bf16.mxu0 0
      %1674 = vmatpush1.bf16.msra.mxu0 0
      %1675 = vmatprep.subr.bf16.mxu0 0
      %1676 = vmatpush1.bf16.msra.mxu0 0
      %1677 = vmatprep.subr.bf16.mxu0 0
      %1678 = vmatpush1.bf16.msra.mxu0 0
      %1679 = vmatprep.subr.bf16.mxu0 0
      %1680 = vmatpush1.bf16.msra.mxu0 0
      %1681 = vmatprep.subr.bf16.mxu0 0
      %1682 = vmatpush1.bf16.msra.mxu0 0
      %1683 = vmatprep.subr.bf16.mxu0 0
      %1684 = vmatpush1.bf16.msra.mxu0 0
      %1685 = vmatprep.subr.bf16.mxu0 0
      %1686 = vmatpush1.bf16.msra.mxu0 0
      %1687 = vmatprep.subr.bf16.mxu0 0
      %1688 = vmatpush1.bf16.msra.mxu0 %v1668
      %1689 = vmatprep.subr.bf16.mxu0 0
      %1690 = vmatpush2.bf16.msra.mxu0 0
      %1691 = vmatprep.subr.bf16.mxu0 0
      %1692 = vmatpush2.bf16.msra.mxu0 0
      %1693 = vmatprep.subr.bf16.mxu0 0
      %1694 = vmatpush2.bf16.msra.mxu0 0
      %1695 = vmatprep.subr.bf16.mxu0 0
      %1696 = vmatpush2.bf16.msra.mxu0 0
      %1697 = vmatprep.subr.bf16.mxu0 0
      %1698 = vmatpush2.bf16.msra.mxu0 0
      %1699 = vmatprep.subr.bf16.mxu0 0
      %1700 = vmatpush2.bf16.msra.mxu0 0
      %1701 = vmatprep.subr.bf16.mxu0 0
      %1702 = vmatpush2.bf16.msra.mxu0 0
      %1703 = vmatprep.subr.bf16.mxu0 0
      %1704 = vmatpush2.bf16.msra.mxu0 0
      %1705 = vmatprep.mubr.bf16.mxu0 0
      %1706 = vmatmul.mubr.bf16.gmra.mxu0 %v1671
      %v1707 = vpop.f32.mrf.mxu0
      %v1708 = vadd.f32 0.0, %v1707
      %v1709 = vpop.f32.mrf.mxu0
      %v1710 = vpop.f32.mrf.mxu0
      %v1711 = vpop.f32.mrf.mxu0
      %1712 = vdwg.mxu0
      %v1715 = vunpack.c.l.b16 %v1662
      %v1716 = vunpack.c.l.b16 %v1663
      %v1717 = vpack.c.b16 %v1716, %v1715
      %v1720 = vsel %vm760, %v1658, 0
      %1722 = vmatprep.subr.bf16.mxu0 0
      %1723 = vmatpush1.bf16.msra.mxu0 0
      %1724 = vmatprep.subr.bf16.mxu0 0
      %1725 = vmatpush1.bf16.msra.mxu0 0
      %1726 = vmatprep.subr.bf16.mxu0 0
      %1727 = vmatpush1.bf16.msra.mxu0 0
      %1728 = vmatprep.subr.bf16.mxu0 0
      %1729 = vmatpush1.bf16.msra.mxu0 0
      %1730 = vmatprep.subr.bf16.mxu0 0
      %1731 = vmatpush1.bf16.msra.mxu0 0
      %1732 = vmatprep.subr.bf16.mxu0 0
      %1733 = vmatpush1.bf16.msra.mxu0 0
      %1734 = vmatprep.subr.bf16.mxu0 0
      %1735 = vmatpush1.bf16.msra.mxu0 0
      %1736 = vmatprep.subr.bf16.mxu0 0
      %1737 = vmatpush1.bf16.msra.mxu0 %v1717
      %1738 = vmatprep.subr.bf16.mxu0 0
      %1739 = vmatpush2.bf16.msra.mxu0 0
      %1740 = vmatprep.subr.bf16.mxu0 0
      %1741 = vmatpush2.bf16.msra.mxu0 0
      %1742 = vmatprep.subr.bf16.mxu0 0
      %1743 = vmatpush2.bf16.msra.mxu0 0
      %1744 = vmatprep.subr.bf16.mxu0 0
      %1745 = vmatpush2.bf16.msra.mxu0 0
      %1746 = vmatprep.subr.bf16.mxu0 0
      %1747 = vmatpush2.bf16.msra.mxu0 0
      %1748 = vmatprep.subr.bf16.mxu0 0
      %1749 = vmatpush2.bf16.msra.mxu0 0
      %1750 = vmatprep.subr.bf16.mxu0 0
      %1751 = vmatpush2.bf16.msra.mxu0 0
      %1752 = vmatprep.subr.bf16.mxu0 0
      %1753 = vmatpush2.bf16.msra.mxu0 0
      %1754 = vmatprep.mubr.bf16.mxu0 0
      %1755 = vmatmul.mubr.bf16.gmra.mxu0 %v1720
      %v1756 = vpop.f32.mrf.mxu0
      %v1757 = vadd.f32 0.0, %v1756
      %v1758 = vpop.f32.mrf.mxu0
      %v1759 = vpop.f32.mrf.mxu0
      %v1760 = vpop.f32.mrf.mxu0
      %1761 = vdwg.mxu0
      %v1762 = vsel %vm589, %v1708, 0.0
      %v1763 = vsel %vm589, %v1757, 0.0
      %v1764 = vadd.f32 %v1762, %v1763
      %s1765 = scalar_lea.vmem %s7, 1
      %v1766 = vld [vmem:[%s1765] sm:$0x1]
      %v1768 = vlaneseq
      %v1769 = vshrl.u32 %v1768, 7
      %v1770 = vsub.s32 0, %v1769
      %v1771 = vrot.slane %v1766, %v1770
      %v1773 = vadd.f32 %v1764, %v1771
      %v1774 = vadd.f32 %v1308, %v1773
      %s1775 = scalar_lea.vmem %s8, 1
      %v1776 = vld [vmem:[%s1775] sm:$0x1]
      %s1777 = scalar_lea.vmem %s9, 1
      %v1778 = vld [vmem:[%s1777] sm:$0x1]
      %v1779 = vsel %vm589, %v1774, 0.0
      %1780 = vadd.xlane.f32.xlu0 %v1779
      %v1781 = vpop.xlane.xlu0 %1780
      %v1782 = vmul.f32 %v1781, %v593
      %v1783 = vsub.f32 %v1774, %v1782
      %v1784 = vmul.f32 %v1783, %v1783
      %v1785 = vsel %vm589, %v1784, 0.0
      %1786 = vadd.xlane.f32.xlu0 %v1785
      %v1787 = vpop.xlane.xlu0 %1786
      %v1788 = vmul.f32 %v1787, %v593
      %v1789 = vadd.f32 %v1788, 1e-12
      %v1790 = vrsqrt.pop %v1789
      %v1791 = vmul.f32 %v1783, %v1790
      %v1793 = vlaneseq
      %v1794 = vshrl.u32 %v1793, 7
      %v1795 = vsub.s32 0, %v1794
      %v1796 = vrot.slane %v1776, %v1795
      %v1798 = vmul.f32 %v1791, %v1796
      %v1800 = vlaneseq
      %v1801 = vshrl.u32 %v1800, 7
      %v1802 = vsub.s32 0, %v1801
      %v1803 = vrot.slane %v1778, %v1802
      %v1805 = vadd.f32 %v1798, %v1803
      %s1806 = scalar_lea.vmem %s10, 16
      %v1807 = vld [vmem:[%s1806] sm:$0xf]
      %v1808 = vld [vmem:[%s1806 + $0x4] sm:$0xf]
      %v1809 = vld [vmem:[%s1806 + $0x8] sm:$0xf]
      %v1810 = vld [vmem:[%s1806 + $0xc] sm:$0xf]
      %v1811 = vpack.c.bf16 %v1805, %v1805
      %s1812 = scalar_lea.vmem %s11, 1
      %v1813 = vld [vmem:[%s1812] sm:$0x1]
      %v1815 = vlaneseq
      %v1816 = vshrl.u32 %v1815, 7
      %v1817 = vsub.s32 0, %v1816
      %v1818 = vrot.slane %v1813, %v1817
      %v1824 = vunpack.c.l.b16 %v1807
      %v1825 = vunpack.c.l.b16 %v1808
      %v1826 = vunpack.c.l.b16 %v1809
      %v1827 = vunpack.c.l.b16 %v1810
      %v1828 = vpack.c.b16 %v1825, %v1824
      %v1829 = vpack.c.b16 %v1827, %v1826
      %v1833 = vsel %vm589, %v1811, 0
      %1835 = vmatprep.subr.bf16.mxu0 0
      %1836 = vmatpush1.bf16.msra.mxu0 0
      %1837 = vmatprep.subr.bf16.mxu0 0
      %1838 = vmatpush1.bf16.msra.mxu0 0
      %1839 = vmatprep.subr.bf16.mxu0 0
      %1840 = vmatpush1.bf16.msra.mxu0 0
      %1841 = vmatprep.subr.bf16.mxu0 0
      %1842 = vmatpush1.bf16.msra.mxu0 0
      %1843 = vmatprep.subr.bf16.mxu0 0
      %1844 = vmatpush1.bf16.msra.mxu0 0
      %1845 = vmatprep.subr.bf16.mxu0 0
      %1846 = vmatpush1.bf16.msra.mxu0 0
      %1847 = vmatprep.subr.bf16.mxu0 0
      %1848 = vmatpush1.bf16.msra.mxu0 %v1829
      %1849 = vmatprep.subr.bf16.mxu0 0
      %1850 = vmatpush1.bf16.msra.mxu0 %v1828
      %1851 = vmatprep.subr.bf16.mxu0 0
      %1852 = vmatpush2.bf16.msra.mxu0 0
      %1853 = vmatprep.subr.bf16.mxu0 0
      %1854 = vmatpush2.bf16.msra.mxu0 0
      %1855 = vmatprep.subr.bf16.mxu0 0
      %1856 = vmatpush2.bf16.msra.mxu0 0
      %1857 = vmatprep.subr.bf16.mxu0 0
      %1858 = vmatpush2.bf16.msra.mxu0 0
      %1859 = vmatprep.subr.bf16.mxu0 0
      %1860 = vmatpush2.bf16.msra.mxu0 0
      %1861 = vmatprep.subr.bf16.mxu0 0
      %1862 = vmatpush2.bf16.msra.mxu0 0
      %1863 = vmatprep.subr.bf16.mxu0 0
      %1864 = vmatpush2.bf16.msra.mxu0 0
      %1865 = vmatprep.subr.bf16.mxu0 0
      %1866 = vmatpush2.bf16.msra.mxu0 0
      %1867 = vmatprep.mubr.bf16.mxu0 0
      %1868 = vmatmul.mubr.bf16.gmra.mxu0 %v1833
      %v1869 = vpop.f32.mrf.mxu0
      %v1870 = vadd.f32 %v1818, %v1869
      %v1871 = vpop.f32.mrf.mxu0
      %v1872 = vpop.f32.mrf.mxu0
      %v1873 = vpop.f32.mrf.mxu0
      %1874 = vdwg.mxu0
      %v1875 = vmul.f32 %v1870, %v1870
      %v1876 = vmul.f32 %v1870, %v1875
      %v1877 = vmul.f32 %v1876, 0.044715
      %v1878 = vadd.f32 %v1870, %v1877
      %v1879 = vmul.f32 %v1878, 0.7978846
      %v1880 = vtanh.pop %v1879
      %v1881 = vadd.f32 %v1880, 1.0
      %v1882 = vmul.f32 %v1881, 0.5
      %v1883 = vmul.f32 %v1870, %v1882
      %s1884 = scalar_lea.vmem %s12, 32
      %v1885 = vld [vmem:[%s1884] sm:$0xf]
      %v1886 = vld [vmem:[%s1884 + $0x4] sm:$0xf]
      %v1887 = vld [vmem:[%s1884 + $0x8] sm:$0xf]
      %v1888 = vld [vmem:[%s1884 + $0xc] sm:$0xf]
      %v1889 = vld [vmem:[%s1884 + $0x10] sm:$0xf]
      %v1890 = vld [vmem:[%s1884 + $0x14] sm:$0xf]
      %v1891 = vld [vmem:[%s1884 + $0x18] sm:$0xf]
      %v1892 = vld [vmem:[%s1884 + $0x1c] sm:$0xf]
      %v1893 = vpack.c.bf16 %v1883, %v1883
      %s1894 = scalar_lea.vmem %s13, 1
      %v1895 = vld [vmem:[%s1894] sm:$0x1]
      %v1897 = vlaneseq
      %v1898 = vshrl.u32 %v1897, 7
      %v1899 = vsub.s32 0, %v1898
      %v1900 = vrot.slane %v1895, %v1899
      %v1910 = vunpack.c.l.b16 %v1885
      %v1911 = vunpack.c.l.b16 %v1886
      %v1912 = vunpack.c.l.b16 %v1887
      %v1913 = vunpack.c.l.b16 %v1888
      %v1914 = vunpack.c.l.b16 %v1889
      %v1915 = vunpack.c.l.b16 %v1890
      %v1916 = vunpack.c.l.b16 %v1891
      %v1917 = vunpack.c.l.b16 %v1892
      %v1918 = vpack.c.b16 %v1911, %v1910
      %v1919 = vpack.c.b16 %v1913, %v1912
      %v1920 = vpack.c.b16 %v1915, %v1914
      %v1921 = vpack.c.b16 %v1917, %v1916
      %v1927 = vsel %vm1235, %v1893, 0
      %1929 = vmatprep.subr.bf16.mxu0 0
      %1930 = vmatpush1.bf16.msra.mxu0 0
      %1931 = vmatprep.subr.bf16.mxu0 0
      %1932 = vmatpush1.bf16.msra.mxu0 0
      %1933 = vmatprep.subr.bf16.mxu0 0
      %1934 = vmatpush1.bf16.msra.mxu0 0
      %1935 = vmatprep.subr.bf16.mxu0 0
      %1936 = vmatpush1.bf16.msra.mxu0 0
      %1937 = vmatprep.subr.bf16.mxu0 0
      %1938 = vmatpush1.bf16.msra.mxu0 %v1921
      %1939 = vmatprep.subr.bf16.mxu0 0
      %1940 = vmatpush1.bf16.msra.mxu0 %v1920
      %1941 = vmatprep.subr.bf16.mxu0 0
      %1942 = vmatpush1.bf16.msra.mxu0 %v1919
      %1943 = vmatprep.subr.bf16.mxu0 0
      %1944 = vmatpush1.bf16.msra.mxu0 %v1918
      %1945 = vmatprep.subr.bf16.mxu0 0
      %1946 = vmatpush2.bf16.msra.mxu0 0
      %1947 = vmatprep.subr.bf16.mxu0 0
      %1948 = vmatpush2.bf16.msra.mxu0 0
      %1949 = vmatprep.subr.bf16.mxu0 0
      %1950 = vmatpush2.bf16.msra.mxu0 0
      %1951 = vmatprep.subr.bf16.mxu0 0
      %1952 = vmatpush2.bf16.msra.mxu0 0
      %1953 = vmatprep.subr.bf16.mxu0 0
      %1954 = vmatpush2.bf16.msra.mxu0 0
      %1955 = vmatprep.subr.bf16.mxu0 0
      %1956 = vmatpush2.bf16.msra.mxu0 0
      %1957 = vmatprep.subr.bf16.mxu0 0
      %1958 = vmatpush2.bf16.msra.mxu0 0
      %1959 = vmatprep.subr.bf16.mxu0 0
      %1960 = vmatpush2.bf16.msra.mxu0 0
      %1961 = vmatprep.mubr.bf16.mxu0 0
      %1962 = vmatmul.mubr.bf16.gmra.mxu0 %v1927
      %v1963 = vpop.f32.mrf.mxu0
      %v1964 = vadd.f32 %v1900, %v1963
      %v1965 = vpop.f32.mrf.mxu0
      %v1966 = vpop.f32.mrf.mxu0
      %v1967 = vpop.f32.mrf.mxu0
      %1968 = vdwg.mxu0
      %v1969 = vadd.f32 %v1805, %v1964
      %s1970 = scalar_lea.vmem %s14, 1
      %v1971 = vld [vmem:[%s1970] sm:$0x1]
      %s1972 = scalar_lea.vmem %s15, 1
      %v1973 = vld [vmem:[%s1972] sm:$0x1]
      %v1974 = vsel %vm589, %v1969, 0.0
      %1975 = vadd.xlane.f32.xlu0 %v1974
      %v1976 = vpop.xlane.xlu0 %1975
      %v1977 = vmul.f32 %v1976, %v593
      %v1978 = vsub.f32 %v1969, %v1977
      %v1979 = vmul.f32 %v1978, %v1978
      %v1980 = vsel %vm589, %v1979, 0.0
      %1981 = vadd.xlane.f32.xlu0 %v1980
      %v1982 = vpop.xlane.xlu0 %1981
      %v1983 = vmul.f32 %v1982, %v593
      %v1984 = vadd.f32 %v1983, 1e-12
      %v1985 = vrsqrt.pop %v1984
      %v1986 = vmul.f32 %v1978, %v1985
      %v1988 = vlaneseq
      %v1989 = vshrl.u32 %v1988, 7
      %v1990 = vsub.s32 0, %v1989
      %v1991 = vrot.slane %v1971, %v1990
      %v1993 = vmul.f32 %v1986, %v1991
      %v1995 = vlaneseq
      %v1996 = vshrl.u32 %v1995, 7
      %v1997 = vsub.s32 0, %v1996
      %v1998 = vrot.slane %v1973, %v1997
      %v2000 = vadd.f32 %v1993, %v1998
      %v2001 = vld [vmem:[%s16] sm:$0xf]
      %v2002 = vld [vmem:[%s16 + $0x4] sm:$0xf]
      %v2003 = vld [vmem:[%s16 + $0x8] sm:$0xf]
      %v2004 = vld [vmem:[%s16 + $0xc] sm:$0xf]
      %v2005 = vpack.c.bf16 %v2000, %v2000
      %v2006 = vld [vmem:[%s17] sm:$0x1]
      %v2008 = vlaneseq
      %v2009 = vshrl.u32 %v2008, 7
      %v2010 = vsub.s32 0, %v2009
      %v2011 = vrot.slane %v2006, %v2010
      %v2017 = vunpack.c.l.b16 %v2001
      %v2018 = vunpack.c.l.b16 %v2002
      %v2019 = vunpack.c.l.b16 %v2003
      %v2020 = vunpack.c.l.b16 %v2004
      %v2021 = vpack.c.b16 %v2018, %v2017
      %v2022 = vpack.c.b16 %v2020, %v2019
      %v2026 = vsel %vm589, %v2005, 0
      %2028 = vmatprep.subr.bf16.mxu0 0
      %2029 = vmatpush1.bf16.msra.mxu0 0
      %2030 = vmatprep.subr.bf16.mxu0 0
      %2031 = vmatpush1.bf16.msra.mxu0 0
      %2032 = vmatprep.subr.bf16.mxu0 0
      %2033 = vmatpush1.bf16.msra.mxu0 0
      %2034 = vmatprep.subr.bf16.mxu0 0
      %2035 = vmatpush1.bf16.msra.mxu0 0
      %2036 = vmatprep.subr.bf16.mxu0 0
      %2037 = vmatpush1.bf16.msra.mxu0 0
      %2038 = vmatprep.subr.bf16.mxu0 0
      %2039 = vmatpush1.bf16.msra.mxu0 0
      %2040 = vmatprep.subr.bf16.mxu0 0
      %2041 = vmatpush1.bf16.msra.mxu0 %v2022
      %2042 = vmatprep.subr.bf16.mxu0 0
      %2043 = vmatpush1.bf16.msra.mxu0 %v2021
      %2044 = vmatprep.subr.bf16.mxu0 0
      %2045 = vmatpush2.bf16.msra.mxu0 0
      %2046 = vmatprep.subr.bf16.mxu0 0
      %2047 = vmatpush2.bf16.msra.mxu0 0
      %2048 = vmatprep.subr.bf16.mxu0 0
      %2049 = vmatpush2.bf16.msra.mxu0 0
      %2050 = vmatprep.subr.bf16.mxu0 0
      %2051 = vmatpush2.bf16.msra.mxu0 0
      %2052 = vmatprep.subr.bf16.mxu0 0
      %2053 = vmatpush2.bf16.msra.mxu0 0
      %2054 = vmatprep.subr.bf16.mxu0 0
      %2055 = vmatpush2.bf16.msra.mxu0 0
      %2056 = vmatprep.subr.bf16.mxu0 0
      %2057 = vmatpush2.bf16.msra.mxu0 0
      %2058 = vmatprep.subr.bf16.mxu0 0
      %2059 = vmatpush2.bf16.msra.mxu0 0
      %2060 = vmatprep.mubr.bf16.mxu0 0
      %2061 = vmatmul.mubr.bf16.gmra.mxu0 %v2026
      %v2062 = vpop.f32.mrf.mxu0
      %v2063 = vadd.f32 %v2011, %v2062
      %v2064 = vpop.f32.mrf.mxu0
      %v2065 = vpop.f32.mrf.mxu0
      %v2066 = vpop.f32.mrf.mxu0
      %2067 = vdwg.mxu0
      %2068 = vst [vmem:[%s584] sm:$0xff] %v2063
      %p2069 = scmp.lt.s32.totalorder %s29, 1
      %s2070 = scalar_select %p2069, %s29, 1
      %s2071 = smul.addr %s2070, 8
      %s2072 = scalar_lea.vmem %s18, %s2071
      // Predicated region
      $region93: #{bert_classifier.1} parent=91 // pred_check
        %p2073 = pneg %p435
      $region94: #{bert_classifier.1} parent=91 // pred_check_branch
        %2075 = sbr.rel (%p2073) target = $region96
      $region95: #{bert_classifier.1} parent=91 // pred_region
        _
      $region96: #{bert_classifier.1} parent=91 // pred_fallthru
        _
    $region92: #{bert_classifier.1} parent=5 // pred_fallthru
      _
    %p2076 = scmp.le.s32.totalorder 2, %s24
    // Predicated region
    $region97: #{bert_classifier.1} parent=5 // pred_check
      %p2077 = pneg %p2076
    $region98: #{bert_classifier.1} parent=5 // pred_check_branch
      %2079 = sbr.rel (%p2077) target = $region100
    $region99: #{bert_classifier.1} parent=5 // pred_region
      %s2080 = ssub.s32 %s24, 2
      // Predicated region
      $region101: #{bert_classifier.1} parent=99 // pred_check
        %p2081 = pneg %p441
      $region102: #{bert_classifier.1} parent=99 // pred_check_branch
        %2083 = sbr.rel (%p2081) target = $region104
      $region103: #{bert_classifier.1} parent=99 // pred_region
        %p2084 = scmp.lt.s32.totalorder %s30, 1
        %s2085 = scalar_select %p2084, %s30, 1
        %s2086 = smul.addr %s2085, 8
        %s2087 = scalar_lea.vmem %s18, %s2086
      $region104: #{bert_classifier.1} parent=99 // pred_fallthru
        _
    $region100: #{bert_classifier.1} parent=5 // pred_fallthru
      _
  $region6: #{bert_classifier.1} parent=0 // loop_footer
    %s28 = sadd.s32 1, %s24
  $region7: #{bert_classifier.1} parent=0 // loop_footer_branch
    %23 = sbr.rel target = $region3
  $region8: #{bert_classifier.1} parent=0 // loop_exit
    _

</llo_original>
